<compile_context>
chip_gen: v6e
topology: v6e:2x2x1
jax: 0.10.0
libtpu: 0.0.40
codegen_flags: <defaults>
</compile_context>

<pallas_src>
import jax
import jax.numpy as jnp
from jax.experimental import pallas as pl
from jax.experimental.pallas import tpu as pltpu

# ---- module configuration (mirrors PSA.__init__ at small sizes) ----
IN_CHANNELS  = 16
OUT_CHANNELS = 128
KERNEL_SIZES = (3, 5, 7, 9)
GROUPS       = (1, 4, 8, 16)
REDUCTION    = 16
NUM_BRANCHES = len(KERNEL_SIZES)
SC   = OUT_CHANNELS // NUM_BRANCHES          # split_channels = 32
MID  = SC // REDUCTION                       # SE hidden = 2
KMAX = max(KERNEL_SIZES)                     # 9
MAX_PAD = KMAX // 2                          # 4

B, H, W = 2, 8, 8
HW  = H * W                                  # 64
KKC = KMAX * KMAX * IN_CHANNELS              # 1296  (im2col K dimension)


def psa_kernel(col_ref, wconv_ref, w1_ref, b1_ref, w2_ref, b2_ref, gsum_ref,
               out_ref):
    """One batch element per grid step.

    col_ref  : (1, H*W, 9*9*Cin)  im2col activations (lane-dense)
    wconv_ref: (9*9*Cin, 4*SC)    fused (zero-padded + concatenated) branch weights
    w1_ref   : (4*SC, 4*MID)      block-diagonal SE squeeze weight
    b1_ref   : (1, 4*MID)
    w2_ref   : (4*MID, 4*SC)      block-diagonal SE excite weight
    b2_ref   : (1, 4*SC)
    gsum_ref : (4*SC, 4*SC)       0/1 per-branch group-sum matrix (softmax denom)
    out_ref  : (1, H*W, 4*SC)
    """
    # ---- all 4 branch convolutions as a single MXU matmul ----
    conv = jnp.dot(col_ref[0], wconv_ref[...],
                   preferred_element_type=jnp.float32)            # (HW, 128)

    # ---- SE weights for all branches at once (lane width 128) ----
    pooled = jnp.mean(conv, axis=0, keepdims=True)                # (1, 128)
    hid = jnp.maximum(
        jnp.dot(pooled, w1_ref[...], preferred_element_type=jnp.float32)
        + b1_ref[...], 0.0)                                       # (1, 8)
    sew = jax.nn.sigmoid(
        jnp.dot(hid, w2_ref[...], preferred_element_type=jnp.float32)
        + b2_ref[...])                                            # (1, 128)

    # Per-branch softmax over each group of SC channels (== nn.Softmax(dim=1)
    # applied to the (B, SC, 1, 1) SE output of each branch).  Sigmoid output
    # is in (0, 1) so max-subtraction is unnecessary; the per-group sum is one
    # tiny (1,128)@(128,128) matmul against the 0/1 group matrix, keeping the
    # whole epilogue at the native 128-lane width.
    e = jnp.exp(sew)
    denom = jnp.dot(e, gsum_ref[...], preferred_element_type=jnp.float32)
    attn = e / denom                                              # (1, 128)
    # (pl.reciprocal(denom, approx=True) would move the divide onto the EUP
    #  slot; kept exact here to stay comfortably inside the 1e-4 tolerance.)

    # ---- channel re-weighting, lane-dense (128-wide) store ----
    out_ref[0] = (conv * attn).astype(out_ref.dtype)


# ------------------------- wrapper-side glue -------------------------

def _im2col(x_nhwc):
    """(B, H, W, Cin) -> (B, H*W, 9*9*Cin); column order = (kh, kw, cin)."""
    xp = jnp.pad(x_nhwc, ((0, 0), (MAX_PAD, MAX_PAD), (MAX_PAD, MAX_PAD), (0, 0)))
    patches = [xp[:, kh:kh + H, kw:kw + W, :]
               for kh in range(KMAX) for kw in range(KMAX)]
    col = jnp.concatenate(patches, axis=-1)            # (B, H, W, 81*Cin)
    return col.reshape(x_nhwc.shape[0], HW, KKC)


def _fuse_conv_weights(conv_ws):
    """Zero-pad each k x k HWIO weight to 9x9 (centered), concat out-channels."""
    slabs = []
    for k, w in zip(KERNEL_SIZES, conv_ws):
        off = (KMAX - k) // 2
        wp = jnp.zeros((KMAX, KMAX, IN_CHANNELS, SC), jnp.float32)
        wp = wp.at[off:off + k, off:off + k].set(w)
        slabs.append(wp)
    wcat = jnp.concatenate(slabs, axis=-1)             # (9, 9, Cin, 4*SC)
    return wcat.reshape(KKC, OUT_CHANNELS)             # (1296, 128)


def _block_diag_repeat(w, n):
    """Place `w` n times along the diagonal of a zero matrix."""
    a, b = w.shape
    out = jnp.zeros((n * a, n * b), w.dtype)
    for i in range(n):
        out = out.at[i * a:(i + 1) * a, i * b:(i + 1) * b].set(w)
    return out


def psa_forward(x_nchw, weights):
    """x_nchw: (B, Cin, H, W) float32. Returns (B, OUT_CHANNELS, H, W)."""
    w3, w5, w7, w9, w1, b1, w2, b2 = weights
    x = jnp.transpose(x_nchw, (0, 2, 3, 1))            # NHWC

    col   = _im2col(x)                                 # (B, 64, 1296)
    wconv = _fuse_conv_weights((w3, w5, w7, w9))       # (1296, 128)
    w1bd  = _block_diag_repeat(w1, NUM_BRANCHES)       # (128, 8)
    w2bd  = _block_diag_repeat(w2, NUM_BRANCHES)       # (8, 128)
    b1bd  = jnp.tile(b1, (1, NUM_BRANCHES))            # (1, 8)
    b2bd  = jnp.tile(b2, (1, NUM_BRANCHES))            # (1, 128)
    grp   = jnp.arange(OUT_CHANNELS) // SC
    gsum  = (grp[:, None] == grp[None, :]).astype(jnp.float32)   # (128, 128)

    out = pl.pallas_call(
        psa_kernel,
        out_shape=jax.ShapeDtypeStruct((B, HW, OUT_CHANNELS), jnp.float32),
        grid_spec=pltpu.PrefetchScalarGridSpec(
            num_scalar_prefetch=0,
            grid=(B,),
            in_specs=[
                pl.BlockSpec((1, HW, KKC), lambda b: (b, 0, 0)),
                pl.BlockSpec((KKC, OUT_CHANNELS), lambda b: (0, 0)),
                pl.BlockSpec((OUT_CHANNELS, NUM_BRANCHES * MID), lambda b: (0, 0)),
                pl.BlockSpec((1, NUM_BRANCHES * MID), lambda b: (0, 0)),
                pl.BlockSpec((NUM_BRANCHES * MID, OUT_CHANNELS), lambda b: (0, 0)),
                pl.BlockSpec((1, OUT_CHANNELS), lambda b: (0, 0)),
                pl.BlockSpec((OUT_CHANNELS, OUT_CHANNELS), lambda b: (0, 0)),
            ],
            out_specs=pl.BlockSpec((1, HW, OUT_CHANNELS), lambda b: (b, 0, 0)),
        ),
        compiler_params=pltpu.CompilerParams(
            dimension_semantics=("parallel",)),
    )(col, wconv, w1bd, b1bd, w2bd, b2bd, gsum)

    # (B, H*W, 4*SC) -> (B, H, W, Cout) -> NCHW.  Channel index = branch*SC + sc,
    # which matches torch.cat(conv_results, dim=1).
    return jnp.transpose(out.reshape(B, H, W, OUT_CHANNELS), (0, 3, 1, 2))


# ------------------------- params & reference -------------------------

def make_weights(key):
    """Deterministic synthetic parameters; grouped convs expanded block-diagonally."""
    keys = jax.random.split(key, NUM_BRANCHES + 4)
    conv_ws = []
    for i, (k, g) in enumerate(zip(KERNEL_SIZES, GROUPS)):
        w = jax.random.normal(keys[i], (k, k, IN_CHANNELS, SC), jnp.float32) * 0.05
        cin_g, cout_g = IN_CHANNELS // g, SC // g
        in_grp = jnp.arange(IN_CHANNELS) // cin_g
        out_grp = jnp.arange(SC) // cout_g
        mask = (in_grp[:, None] == out_grp[None, :]).astype(jnp.float32)
        conv_ws.append(w * mask[None, None, :, :])     # block-diagonal = grouped conv
    w1 = jax.random.normal(keys[NUM_BRANCHES + 0], (SC, MID), jnp.float32) * 0.1
    b1 = jax.random.normal(keys[NUM_BRANCHES + 1], (1, MID), jnp.float32) * 0.1
    w2 = jax.random.normal(keys[NUM_BRANCHES + 2], (MID, SC), jnp.float32) * 0.1
    b2 = jax.random.normal(keys[NUM_BRANCHES + 3], (1, SC), jnp.float32) * 0.1
    return tuple(conv_ws) + (w1, b1, w2, b2)


def psa_reference(x_nchw, weights):
    """Pure-JAX reference matching the PyTorch forward (softmax over SC, dim=1)."""
    conv_ws = weights[:NUM_BRANCHES]
    w1, b1, w2, b2 = weights[NUM_BRANCHES:]
    x = jnp.transpose(x_nchw, (0, 2, 3, 1))
    outs = []
    for wk in conv_ws:
        conv = jax.lax.conv_general_dilated(
            x, wk, window_strides=(1, 1), padding="SAME",
            dimension_numbers=("NHWC", "HWIO", "NHWC"))
        pooled = jnp.mean(conv, axis=(1, 2))            # (B, SC)
        hid = jnp.maximum(pooled @ w1 + b1, 0.0)
        sew = jax.nn.sigmoid(hid @ w2 + b2)
        attn = jax.nn.softmax(sew, axis=-1)
        outs.append(conv * attn[:, None, None, :])
    out = jnp.concatenate(outs, axis=-1)                # NHWC
    return jnp.transpose(out, (0, 3, 1, 2))


if __name__ == "__main__":
    key = jax.random.PRNGKey(0)
    kx, kw = jax.random.split(key)
    x = jax.random.normal(kx, (B, IN_CHANNELS, H, W), jnp.float32)
    weights = make_weights(kw)

    out = psa_forward(x, weights)
    out = jax.block_until_ready(out)

    assert out.shape == (B, OUT_CHANNELS, H, W)
    ref = psa_reference(x, weights)
    max_err = float(jnp.max(jnp.abs(out - ref)))
    assert jnp.allclose(out, ref, atol=1e-4, rtol=1e-4), f"max abs err {max_err}"
    print("KERNEL_OK")
</pallas_src>

<mosaic_0001>
module attributes {stable_mosaic.version = 11 : i64} {
  func.func @psa_kernel(%arg0: i32, %arg1: memref<1x64x1296xf32, #tpu.memory_space<vmem>>, %arg2: memref<1296x128xf32, #tpu.memory_space<vmem>>, %arg3: memref<128x8xf32, #tpu.memory_space<vmem>>, %arg4: memref<1x8xf32, #tpu.memory_space<vmem>>, %arg5: memref<8x128xf32, #tpu.memory_space<vmem>>, %arg6: memref<1x128xf32, #tpu.memory_space<vmem>>, %arg7: memref<128x128xf32, #tpu.memory_space<vmem>>, %arg8: memref<1x64x128xf32, #tpu.memory_space<vmem>>) attributes {dimension_semantics = [#tpu.dimension_semantics<parallel>], iteration_bounds = array<i64: 2>, scalar_prefetch = 0 : i64, scratch_operands = 0 : i64, tpu.core_type = #tpu.core_type<tc>, window_params = [{transform_indices = @transform_0, window_bounds = array<i64: 1, 64, 1296>}, {pipeline_mode = #tpu.pipeline_mode<synchronous>, transform_indices = @transform_1, window_bounds = array<i64: 1296, 128>}, {pipeline_mode = #tpu.pipeline_mode<synchronous>, transform_indices = @transform_2, window_bounds = array<i64: 128, 8>}, {pipeline_mode = #tpu.pipeline_mode<synchronous>, transform_indices = @transform_3, window_bounds = array<i64: 1, 8>}, {pipeline_mode = #tpu.pipeline_mode<synchronous>, transform_indices = @transform_4, window_bounds = array<i64: 8, 128>}, {pipeline_mode = #tpu.pipeline_mode<synchronous>, transform_indices = @transform_5, window_bounds = array<i64: 1, 128>}, {pipeline_mode = #tpu.pipeline_mode<synchronous>, transform_indices = @transform_6, window_bounds = array<i64: 128, 128>}, {transform_indices = @transform_7, window_bounds = array<i64: 1, 64, 128>}]} {
    %c0 = arith.constant 0 : index
    %c0_0 = arith.constant 0 : index
    %c0_1 = arith.constant 0 : index
    %0 = vector.load %arg1[%c0, %c0_0, %c0_1] : memref<1x64x1296xf32, #tpu.memory_space<vmem>>, vector<1x64x1296xf32>
    %1 = vector.shape_cast %0 : vector<1x64x1296xf32> to vector<64x1296xf32>
    %c0_2 = arith.constant 0 : index
    %c0_3 = arith.constant 0 : index
    %2 = vector.load %arg2[%c0_2, %c0_3] : memref<1296x128xf32, #tpu.memory_space<vmem>>, vector<1296x128xf32>
    %cst = arith.constant dense<0.000000e+00> : vector<64x128xf32>
    %3 = tpu.matmul %1, %2, %cst {dimension_numbers = #tpu.dot_dimension_numbers<[1], [0], [0], [1], [0, 0, 1, 1], [], []>} : vector<64x1296xf32>, vector<1296x128xf32>, vector<64x128xf32> -> vector<64x128xf32>
    %cst_4 = arith.constant dense<0.000000e+00> : vector<128xf32>
    %4 = vector.multi_reduction <add>, %3, %cst_4 [0] : vector<64x128xf32> to vector<128xf32>
    %5 = vector.shape_cast %4 : vector<128xf32> to vector<1x128xf32>
    %cst_5 = arith.constant 6.400000e+01 : f32
    %6 = vector.broadcast %cst_5 : f32 to vector<1x128xf32>
    %7 = arith.divf %5, %6 : vector<1x128xf32>
    %c0_6 = arith.constant 0 : index
    %c0_7 = arith.constant 0 : index
    %8 = vector.load %arg3[%c0_6, %c0_7] : memref<128x8xf32, #tpu.memory_space<vmem>>, vector<128x8xf32>
    %cst_8 = arith.constant dense<0.000000e+00> : vector<1x8xf32>
    %9 = tpu.matmul %7, %8, %cst_8 {dimension_numbers = #tpu.dot_dimension_numbers<[1], [0], [0], [1], [0, 0, 1, 1], [], []>} : vector<1x128xf32>, vector<128x8xf32>, vector<1x8xf32> -> vector<1x8xf32>
    %c0_9 = arith.constant 0 : index
    %c0_10 = arith.constant 0 : index
    %10 = vector.load %arg4[%c0_9, %c0_10] : memref<1x8xf32, #tpu.memory_space<vmem>>, vector<1x8xf32>
    %11 = arith.addf %9, %10 : vector<1x8xf32>
    %cst_11 = arith.constant 0.000000e+00 : f32
    %12 = vector.broadcast %cst_11 : f32 to vector<1x8xf32>
    %13 = arith.maximumf %11, %12 : vector<1x8xf32>
    %c0_12 = arith.constant 0 : index
    %c0_13 = arith.constant 0 : index
    %14 = vector.load %arg5[%c0_12, %c0_13] : memref<8x128xf32, #tpu.memory_space<vmem>>, vector<8x128xf32>
    %cst_14 = arith.constant dense<0.000000e+00> : vector<1x128xf32>
    %15 = tpu.matmul %13, %14, %cst_14 {dimension_numbers = #tpu.dot_dimension_numbers<[1], [0], [0], [1], [0, 0, 1, 1], [], []>} : vector<1x8xf32>, vector<8x128xf32>, vector<1x128xf32> -> vector<1x128xf32>
    %c0_15 = arith.constant 0 : index
    %c0_16 = arith.constant 0 : index
    %16 = vector.load %arg6[%c0_15, %c0_16] : memref<1x128xf32, #tpu.memory_space<vmem>>, vector<1x128xf32>
    %17 = arith.addf %15, %16 : vector<1x128xf32>
    %18 = arith.negf %17 : vector<1x128xf32>
    %19 = math.exp %18 : vector<1x128xf32>
    %cst_17 = arith.constant 1.000000e+00 : f32
    %20 = vector.broadcast %cst_17 : f32 to vector<1x128xf32>
    %21 = arith.addf %20, %19 : vector<1x128xf32>
    %22 = arith.divf %20, %21 : vector<1x128xf32>
    %23 = math.exp %22 : vector<1x128xf32>
    %c0_18 = arith.constant 0 : index
    %c0_19 = arith.constant 0 : index
    %24 = vector.load %arg7[%c0_18, %c0_19] : memref<128x128xf32, #tpu.memory_space<vmem>>, vector<128x128xf32>
    %cst_20 = arith.constant dense<0.000000e+00> : vector<1x128xf32>
    %25 = tpu.matmul %23, %24, %cst_20 {dimension_numbers = #tpu.dot_dimension_numbers<[1], [0], [0], [1], [0, 0, 1, 1], [], []>} : vector<1x128xf32>, vector<128x128xf32>, vector<1x128xf32> -> vector<1x128xf32>
    %26 = arith.divf %23, %25 : vector<1x128xf32>
    %27 = vector.broadcast %26 : vector<1x128xf32> to vector<64x128xf32>
    %28 = arith.mulf %3, %27 : vector<64x128xf32>
    %c0_21 = arith.constant 0 : index
    %c0_22 = arith.constant 0 : index
    %c0_23 = arith.constant 0 : index
    %29 = vector.load %arg8[%c0_21, %c0_22, %c0_23] : memref<1x64x128xf32, #tpu.memory_space<vmem>>, vector<1x64x128xf32>
    %30 = vector.shape_cast %29 : vector<1x64x128xf32> to vector<64x128xf32>
    %31 = vector.shape_cast %28 : vector<64x128xf32> to vector<1x64x128xf32>
    tpu.vector_store %arg8[%c0_21, %c0_22, %c0_23], %31 {strides = array<i32>} : memref<1x64x128xf32, #tpu.memory_space<vmem>>, vector<1x64x128xf32>,
    return
  }
  func.func @transform_0(%arg0: i32) -> (i32, i32, i32) {
    %c0_i32 = arith.constant 0 : i32
    %c0_i32_0 = arith.constant 0 : i32
    %c0_i32_1 = arith.constant 0 : i32
    return %arg0, %c0_i32, %c0_i32_0 : i32, i32, i32
  }
  func.func @transform_1(%arg0: i32) -> (i32, i32) {
    %c0_i32 = arith.constant 0 : i32
    %c0_i32_0 = arith.constant 0 : i32
    %c0_i32_1 = arith.constant 0 : i32
    return %c0_i32, %c0_i32_0 : i32, i32
  }
  func.func @transform_2(%arg0: i32) -> (i32, i32) {
    %c0_i32 = arith.constant 0 : i32
    %c0_i32_0 = arith.constant 0 : i32
    %c0_i32_1 = arith.constant 0 : i32
    return %c0_i32, %c0_i32_0 : i32, i32
  }
  func.func @transform_3(%arg0: i32) -> (i32, i32) {
    %c0_i32 = arith.constant 0 : i32
    %c0_i32_0 = arith.constant 0 : i32
    %c0_i32_1 = arith.constant 0 : i32
    return %c0_i32, %c0_i32_0 : i32, i32
  }
  func.func @transform_4(%arg0: i32) -> (i32, i32) {
    %c0_i32 = arith.constant 0 : i32
    %c0_i32_0 = arith.constant 0 : i32
    %c0_i32_1 = arith.constant 0 : i32
    return %c0_i32, %c0_i32_0 : i32, i32
  }
  func.func @transform_5(%arg0: i32) -> (i32, i32) {
    %c0_i32 = arith.constant 0 : i32
    %c0_i32_0 = arith.constant 0 : i32
    %c0_i32_1 = arith.constant 0 : i32
    return %c0_i32, %c0_i32_0 : i32, i32
  }
  func.func @transform_6(%arg0: i32) -> (i32, i32) {
    %c0_i32 = arith.constant 0 : i32
    %c0_i32_0 = arith.constant 0 : i32
    %c0_i32_1 = arith.constant 0 : i32
    return %c0_i32, %c0_i32_0 : i32, i32
  }
  func.func @transform_7(%arg0: i32) -> (i32, i32, i32) {
    %c0_i32 = arith.constant 0 : i32
    %c0_i32_0 = arith.constant 0 : i32
    %c0_i32_1 = arith.constant 0 : i32
    return %arg0, %c0_i32, %c0_i32_0 : i32, i32, i32
  }
}

</mosaic_0001>

<llo_original>
// kernel: tpu_custom_call.1
$region0: #{tpu_custom_call.1}
  #allocation0 [shape = 'u32[]', space=smem, size = 0x4, offset = 0x4, fixed_abs, tag = 'smem constant byte address 0x4 - core index']
  #allocation1 [shape = 'u32[144,128]{1,0:T(1,128)}', space=vmem, size = 0x12000, scoped, tag = 'internal scratch']
  %s0 = inlined_call_operand.hbm [shape: f32[2,64,1296], index: 0, kind: input, shape index: {}]
  %s1 = inlined_call_operand.hbm [shape: f32[1296,128], index: 1, kind: input, shape index: {}]
  %s2 = inlined_call_operand.vmem [shape: f32[128,8], index: 2, kind: input, shape index: {}]
  %s3 = inlined_call_operand.vmem [shape: f32[1,8], index: 3, kind: input, shape index: {}]
  %s4 = inlined_call_operand.vmem [shape: f32[8,128], index: 4, kind: input, shape index: {}]
  %s5 = inlined_call_operand.vmem [shape: f32[1,128], index: 5, kind: input, shape index: {}]
  %s6 = inlined_call_operand.vmem [shape: f32[128,128], index: 6, kind: input, shape index: {}]
  %s7 = inlined_call_operand.hbm [shape: f32[2,64,128], index: 7, kind: output, shape index: {}]
  %s8 = sld [smem:[#allocation0]]
  $region69: #{tpu_custom_call.1} parent=0
    _
  %s10 = ssub.s32 1, %s8
  %s11 = scalar_select 0, %s10, %s8
  $region1: #{tpu_custom_call.1} parent=0
    #allocation2 [shape = 'u8[720896]{0}', space=vmem, size = 0xb0000, scoped, tag = 'input window, operand 0']
    #allocation3 [shape = 's32[2]{0}', space=sflag, size = 0x8, scoped, tag = 'scoped memory for tpu_custom_call.1']
    #allocation4 [shape = 's32[2]{0}', space=sflag, size = 0x8, scoped, tag = 'scoped memory for tpu_custom_call.1']
    #allocation5 [shape = 'u8[663552]{0}', space=vmem, size = 0xa2000, scoped, tag = 'input window, operand 1, single buffered']
    #allocation6 [shape = 's32[1]{0}', space=sflag, size = 0x4, scoped, tag = 'scoped memory for tpu_custom_call.1']
    #allocation7 [shape = 'u8[65536]{0}', space=vmem, size = 0x10000, scoped, tag = 'output window, operand 0']
    %12 = vsyncpa [#allocation3], 0
    %s13 = scalar_lea.sflag [#allocation3], 1
    %14 = vsyncpa %s13, 0
    %15 = vsyncpa [#allocation6], 0
    %16 = vsyncpa [#allocation4], 0
    %s17 = scalar_lea.sflag [#allocation4], 1
    %18 = vsyncpa %s17, 0
    loop: start=0, step=1, limit=4
    $region2: #{tpu_custom_call.1} parent=1 // loop_pre_header
      _
    $region3: #{tpu_custom_call.1} parent=1 // loop_header
      %s20 = sphi 0, %s24
      %p21 = scmp.ge.s32.totalorder %s20, 4
      %s30 = sphi 0, %s32
      %s33 = sphi 0, %s30
      %s34 = sphi 0, %s33
      %s50 = sphi 0, %s34
      %s54 = sphi 0, %s54
      %s56 = sphi 0, %s54
      %s57 = sphi 0, %s56
      %s71 = sphi 0, %s57
      %s75 = sphi 0, %s75
      %s77 = sphi 0, %s75
      %s78 = sphi 0, %s77
      %s92 = sphi 0, %s78
      %s96 = sphi 0, %s96
      %s98 = sphi 0, %s96
      %s99 = sphi 0, %s98
      %s113 = sphi 0, %s99
      %s117 = sphi 0, %s117
      %s119 = sphi 0, %s117
      %s120 = sphi 0, %s119
      %s134 = sphi 0, %s120
      %s138 = sphi 0, %s138
      %s140 = sphi 0, %s138
      %s141 = sphi 0, %s140
      %s155 = sphi 0, %s141
      %s159 = sphi 0, %s159
      %s161 = sphi 0, %s159
      %s162 = sphi 0, %s161
      %s176 = sphi 0, %s162
      %s182 = sphi 0, %s184
      %s185 = sphi 0, %s182
      %s186 = sphi 0, %s185
      %s202 = sphi 0, %s186
    $region4: #{tpu_custom_call.1} parent=1 // loop_header_branch
      %23 = sbr.rel (%p21) target = $region8
    $region5: #{tpu_custom_call.1} parent=1 // loop_body
      %s25 = ssub.s32 %s20, 1
      %s26 = ssub.s32 %s20, 2
      %s27 = sadd.s32 %s20, 1
      %s28 = ssub.s32 %s20, %s27
      %p29 = scmp.eq.s32.totalorder %s28, 0
      %s31 = sadd.s32 %s30, 1
      %s32 = scalar_select %p29, %s30, %s31
      %p35 = pneg %p29
      %p36 = scmp.eq.s32.totalorder %s20, 1
      %p37 = por %p35, %p36
      %p38 = scmp.ne.s32.totalorder %s30, %s33
      %p39 = scmp.eq.s32.totalorder %s20, 0
      %p40 = por %p38, %p39
      %p41 = scmp.ne.s32.totalorder %s30, %s33
      %p42 = scmp.eq.s32.totalorder %s25, 1
      %p43 = por %p41, %p42
      %p44 = scmp.ne.s32.totalorder %s33, %s34
      %p45 = scmp.eq.s32.totalorder %s25, 0
      %p46 = por %p44, %p45
      %p47 = scmp.ne.s32.totalorder %s33, %s34
      %p48 = scmp.eq.s32.totalorder %s26, 1
      %p49 = por %p47, %p48
      %p51 = scmp.ne.s32.totalorder %s34, %s50
      %p52 = scmp.eq.s32.totalorder %s26, 0
      %p53 = por %p51, %p52
      %s55 = sadd.s32 %s54, 1
      %p58 = scmp.eq.s32.totalorder %s20, 1
      %p59 = scmp.ne.s32.totalorder %s54, %s56
      %p60 = scmp.eq.s32.totalorder %s20, 0
      %p61 = por %p59, %p60
      %p62 = scmp.ne.s32.totalorder %s54, %s56
      %p63 = scmp.eq.s32.totalorder %s25, 1
      %p64 = por %p62, %p63
      %p65 = scmp.ne.s32.totalorder %s56, %s57
      %p66 = scmp.eq.s32.totalorder %s25, 0
      %p67 = por %p65, %p66
      %p68 = scmp.ne.s32.totalorder %s56, %s57
      %p69 = scmp.eq.s32.totalorder %s26, 1
      %p70 = por %p68, %p69
      %p72 = scmp.ne.s32.totalorder %s57, %s71
      %p73 = scmp.eq.s32.totalorder %s26, 0
      %p74 = por %p72, %p73
      %s76 = sadd.s32 %s75, 1
      %p79 = scmp.eq.s32.totalorder %s20, 1
      %p80 = scmp.ne.s32.totalorder %s75, %s77
      %p81 = scmp.eq.s32.totalorder %s20, 0
      %p82 = por %p80, %p81
      %p83 = scmp.ne.s32.totalorder %s75, %s77
      %p84 = scmp.eq.s32.totalorder %s25, 1
      %p85 = por %p83, %p84
      %p86 = scmp.ne.s32.totalorder %s77, %s78
      %p87 = scmp.eq.s32.totalorder %s25, 0
      %p88 = por %p86, %p87
      %p89 = scmp.ne.s32.totalorder %s77, %s78
      %p90 = scmp.eq.s32.totalorder %s26, 1
      %p91 = por %p89, %p90
      %p93 = scmp.ne.s32.totalorder %s78, %s92
      %p94 = scmp.eq.s32.totalorder %s26, 0
      %p95 = por %p93, %p94
      %s97 = sadd.s32 %s96, 1
      %p100 = scmp.eq.s32.totalorder %s20, 1
      %p101 = scmp.ne.s32.totalorder %s96, %s98
      %p102 = scmp.eq.s32.totalorder %s20, 0
      %p103 = por %p101, %p102
      %p104 = scmp.ne.s32.totalorder %s96, %s98
      %p105 = scmp.eq.s32.totalorder %s25, 1
      %p106 = por %p104, %p105
      %p107 = scmp.ne.s32.totalorder %s98, %s99
      %p108 = scmp.eq.s32.totalorder %s25, 0
      %p109 = por %p107, %p108
      %p110 = scmp.ne.s32.totalorder %s98, %s99
      %p111 = scmp.eq.s32.totalorder %s26, 1
      %p112 = por %p110, %p111
      %p114 = scmp.ne.s32.totalorder %s99, %s113
      %p115 = scmp.eq.s32.totalorder %s26, 0
      %p116 = por %p114, %p115
      %s118 = sadd.s32 %s117, 1
      %p121 = scmp.eq.s32.totalorder %s20, 1
      %p122 = scmp.ne.s32.totalorder %s117, %s119
      %p123 = scmp.eq.s32.totalorder %s20, 0
      %p124 = por %p122, %p123
      %p125 = scmp.ne.s32.totalorder %s117, %s119
      %p126 = scmp.eq.s32.totalorder %s25, 1
      %p127 = por %p125, %p126
      %p128 = scmp.ne.s32.totalorder %s119, %s120
      %p129 = scmp.eq.s32.totalorder %s25, 0
      %p130 = por %p128, %p129
      %p131 = scmp.ne.s32.totalorder %s119, %s120
      %p132 = scmp.eq.s32.totalorder %s26, 1
      %p133 = por %p131, %p132
      %p135 = scmp.ne.s32.totalorder %s120, %s134
      %p136 = scmp.eq.s32.totalorder %s26, 0
      %p137 = por %p135, %p136
      %s139 = sadd.s32 %s138, 1
      %p142 = scmp.eq.s32.totalorder %s20, 1
      %p143 = scmp.ne.s32.totalorder %s138, %s140
      %p144 = scmp.eq.s32.totalorder %s20, 0
      %p145 = por %p143, %p144
      %p146 = scmp.ne.s32.totalorder %s138, %s140
      %p147 = scmp.eq.s32.totalorder %s25, 1
      %p148 = por %p146, %p147
      %p149 = scmp.ne.s32.totalorder %s140, %s141
      %p150 = scmp.eq.s32.totalorder %s25, 0
      %p151 = por %p149, %p150
      %p152 = scmp.ne.s32.totalorder %s140, %s141
      %p153 = scmp.eq.s32.totalorder %s26, 1
      %p154 = por %p152, %p153
      %p156 = scmp.ne.s32.totalorder %s141, %s155
      %p157 = scmp.eq.s32.totalorder %s26, 0
      %p158 = por %p156, %p157
      %s160 = sadd.s32 %s159, 1
      %p163 = scmp.eq.s32.totalorder %s20, 1
      %p164 = scmp.ne.s32.totalorder %s159, %s161
      %p165 = scmp.eq.s32.totalorder %s20, 0
      %p166 = por %p164, %p165
      %p167 = scmp.ne.s32.totalorder %s159, %s161
      %p168 = scmp.eq.s32.totalorder %s25, 1
      %p169 = por %p167, %p168
      %p170 = scmp.ne.s32.totalorder %s161, %s162
      %p171 = scmp.eq.s32.totalorder %s25, 0
      %p172 = por %p170, %p171
      %p173 = scmp.ne.s32.totalorder %s161, %s162
      %p174 = scmp.eq.s32.totalorder %s26, 1
      %p175 = por %p173, %p174
      %p177 = scmp.ne.s32.totalorder %s162, %s176
      %p178 = scmp.eq.s32.totalorder %s26, 0
      %p179 = por %p177, %p178
      %s180 = ssub.s32 %s20, %s27
      %p181 = scmp.eq.s32.totalorder %s180, 0
      %s183 = sadd.s32 %s182, 1
      %s184 = scalar_select %p181, %s182, %s183
      %p187 = pneg %p181
      %p188 = scmp.eq.s32.totalorder %s20, 1
      %p189 = por %p187, %p188
      %p190 = scmp.ne.s32.totalorder %s182, %s185
      %p191 = scmp.eq.s32.totalorder %s20, 0
      %p192 = por %p190, %p191
      %p193 = scmp.ne.s32.totalorder %s182, %s185
      %p194 = scmp.eq.s32.totalorder %s25, 1
      %p195 = por %p193, %p194
      %p196 = scmp.ne.s32.totalorder %s185, %s186
      %p197 = scmp.eq.s32.totalorder %s25, 0
      %p198 = por %p196, %p197
      %p199 = scmp.ne.s32.totalorder %s185, %s186
      %p200 = scmp.eq.s32.totalorder %s26, 1
      %p201 = por %p199, %p200
      %p203 = scmp.ne.s32.totalorder %s186, %s202
      %p204 = scmp.eq.s32.totalorder %s26, 0
      %p205 = por %p203, %p204
      %p206 = scmp.le.s32.totalorder 1, %s20
      %p207 = scmp.lt.s32.totalorder %s20, 3
      %p208 = pnand %p206, %p207
      %p209 = pneg %p208
      // Predicated region
      $region9: #{tpu_custom_call.1} parent=5 // pred_check
        _
      $region10: #{tpu_custom_call.1} parent=5 // pred_check_branch
        %211 = sbr.rel (%p208) target = $region12
      $region11: #{tpu_custom_call.1} parent=5 // pred_region
        %s212 = ssub.s32 %s20, 1
        // Predicated region
        $region13: #{tpu_custom_call.1} parent=11 // pred_check
          %p213 = pneg %p67
        $region14: #{tpu_custom_call.1} parent=11 // pred_check_branch
          %215 = sbr.rel (%p213) target = $region16
        $region15: #{tpu_custom_call.1} parent=11 // pred_region
          %s217 = ssub.s32 20736, 20736
          %218 = vsyncadd [#allocation6], %s217
          %s219 = sshll.u32 [#allocation5], 4
          %s220 = int_to_ptr.vmem [resolvable:$true] %s219
          %225 = dma.hbm_to_vmem [thread:$0]  %s1, 20736, %s220, [#allocation6], 128, 128, 8
        $region16: #{tpu_custom_call.1} parent=11 // pred_fallthru
          _
        // Predicated region
        $region17: #{tpu_custom_call.1} parent=11 // pred_check
          %p226 = pneg %p88
        $region18: #{tpu_custom_call.1} parent=11 // pred_check_branch
          %228 = sbr.rel (%p226) target = $region20
        $region19: #{tpu_custom_call.1} parent=11 // pred_region
          _
        $region20: #{tpu_custom_call.1} parent=11 // pred_fallthru
          _
        // Predicated region
        $region21: #{tpu_custom_call.1} parent=11 // pred_check
          %p229 = pneg %p109
        $region22: #{tpu_custom_call.1} parent=11 // pred_check_branch
          %231 = sbr.rel (%p229) target = $region24
        $region23: #{tpu_custom_call.1} parent=11 // pred_region
          _
        $region24: #{tpu_custom_call.1} parent=11 // pred_fallthru
          _
        // Predicated region
        $region25: #{tpu_custom_call.1} parent=11 // pred_check
          %p232 = pneg %p130
        $region26: #{tpu_custom_call.1} parent=11 // pred_check_branch
          %234 = sbr.rel (%p232) target = $region28
        $region27: #{tpu_custom_call.1} parent=11 // pred_region
          _
        $region28: #{tpu_custom_call.1} parent=11 // pred_fallthru
          _
        // Predicated region
        $region29: #{tpu_custom_call.1} parent=11 // pred_check
          %p235 = pneg %p151
        $region30: #{tpu_custom_call.1} parent=11 // pred_check_branch
          %237 = sbr.rel (%p235) target = $region32
        $region31: #{tpu_custom_call.1} parent=11 // pred_region
          _
        $region32: #{tpu_custom_call.1} parent=11 // pred_fallthru
          _
        // Predicated region
        $region33: #{tpu_custom_call.1} parent=11 // pred_check
          %p238 = pneg %p172
        $region34: #{tpu_custom_call.1} parent=11 // pred_check_branch
          %240 = sbr.rel (%p238) target = $region36
        $region35: #{tpu_custom_call.1} parent=11 // pred_region
          _
        $region36: #{tpu_custom_call.1} parent=11 // pred_fallthru
          _
      $region12: #{tpu_custom_call.1} parent=5 // pred_fallthru
        _
      %p241 = scmp.lt.s32.totalorder %s20, 2
      // Predicated region
      $region37: #{tpu_custom_call.1} parent=5 // pred_check
        %p242 = pneg %p241
      $region38: #{tpu_custom_call.1} parent=5 // pred_check_branch
        %244 = sbr.rel (%p242) target = $region40
      $region39: #{tpu_custom_call.1} parent=5 // pred_region
        // Predicated region
        $region41: #{tpu_custom_call.1} parent=39 // pred_check
          %p245 = pneg %p40
        $region42: #{tpu_custom_call.1} parent=39 // pred_check_branch
          %247 = sbr.rel (%p245) target = $region44
        $region43: #{tpu_custom_call.1} parent=39 // pred_region
          %s248 = sand.u32 %s30, 1
          %s249 = scalar_lea.sflag [#allocation3], %s248
          %s250 = sand.u32 %s30, 1
          %s251 = smul.addr %s250, 704
          %s252 = scalar_lea.vmem [#allocation2], %s251
          %s254 = ssub.s32 11264, 11264
          %255 = vsyncadd %s249, %s254
          %s256 = smul.addr %s20, 88
          %s257 = smul.addr %s256, 128
          %s258 = scalar_lea.hbm %s0, %s257
          %s259 = sshll.u32 %s252, 4
          %s260 = int_to_ptr.vmem [resolvable:$true] %s259
          %265 = dma.hbm_to_vmem [thread:$0]  %s258, 11264, %s260, %s249, 1408, 1408, 88
        $region44: #{tpu_custom_call.1} parent=39 // pred_fallthru
          _
      $region40: #{tpu_custom_call.1} parent=5 // pred_fallthru
        _
      %p266 = scmp.le.s32.totalorder 1, %s20
      %p267 = scmp.lt.s32.totalorder %s20, 3
      %p268 = pnand %p266, %p267
      %p269 = pneg %p268
      // Predicated region
      $region45: #{tpu_custom_call.1} parent=5 // pred_check
        _
      $region46: #{tpu_custom_call.1} parent=5 // pred_check_branch
        %271 = sbr.rel (%p268) target = $region48
      $region47: #{tpu_custom_call.1} parent=5 // pred_region
        %s272 = ssub.s32 %s20, 1
        %s273 = sand.u32 %s33, 1
        %s274 = scalar_lea.sflag [#allocation3], %s273
        %s275 = sand.u32 %s33, 1
        %s276 = smul.addr %s275, 704
        %s277 = scalar_lea.vmem [#allocation2], %s276
        // Predicated region
        $region49: #{tpu_custom_call.1} parent=47 // pred_check
          %p278 = pneg %p46
        $region50: #{tpu_custom_call.1} parent=47 // pred_check_branch
          %280 = sbr.rel (%p278) target = $region52
        $region51: #{tpu_custom_call.1} parent=47 // pred_region
          %281 = dma.done %s274, 11264
        $region52: #{tpu_custom_call.1} parent=47 // pred_fallthru
          _
        // Predicated region
        $region53: #{tpu_custom_call.1} parent=47 // pred_check
          %p282 = pneg %p67
        $region54: #{tpu_custom_call.1} parent=47 // pred_check_branch
          %284 = sbr.rel (%p282) target = $region56
        $region55: #{tpu_custom_call.1} parent=47 // pred_region
          %285 = dma.done [#allocation6], 20736
        $region56: #{tpu_custom_call.1} parent=47 // pred_fallthru
          _
        %s286 = sand.u32 %s33, 1
        %s287 = scalar_lea.sflag [#allocation3], %s286
        %s288 = sand.u32 %s33, 1
        %s289 = smul.addr %s288, 704
        %s290 = scalar_lea.vmem [#allocation2], %s289
        %p291 = pneg %p46
        %p292 = pneg %p43
        %p293 = pneg %p67
        %p294 = pneg %p64
        %p295 = pneg %p88
        %p296 = pneg %p85
        %p297 = pneg %p109
        %p298 = pneg %p106
        %p299 = pneg %p130
        %p300 = pneg %p127
        %p301 = pneg %p151
        %p302 = pneg %p148
        %p303 = pneg %p172
        %p304 = pneg %p169
        %p305 = pneg %p198
        %p306 = pneg %p195
        %s307 = sand.u32 %s185, 1
        %s308 = scalar_lea.sflag [#allocation4], %s307
        %s309 = sand.u32 %s185, 1
        %s310 = smul.addr %s309, 64
        %s311 = scalar_lea.vmem [#allocation7], %s310
        %v312 = vld [vmem:[%s277] sm:$0xff]
        %v313 = vld [vmem:[%s277 + $0x8] sm:$0xff]
        %v314 = vld [vmem:[%s277 + $0x10] sm:$0xff]
        %v315 = vld [vmem:[%s277 + $0x18] sm:$0xff]
        %v316 = vld [vmem:[%s277 + $0x20] sm:$0xff]
        %v317 = vld [vmem:[%s277 + $0x28] sm:$0xff]
        %v318 = vld [vmem:[%s277 + $0x30] sm:$0xff]
        %v319 = vld [vmem:[%s277 + $0x38] sm:$0xff]
        %v320 = vld [vmem:[%s277 + $0x40] sm:$0xff]
        %v321 = vld [vmem:[%s277 + $0x48] sm:$0xff]
        %v322 = vld [vmem:[%s277 + $0x50] sm:$0xff]
        %v323 = vld [vmem:[%s277 + $0x58] sm:$0xff]
        %v324 = vld [vmem:[%s277 + $0x60] sm:$0xff]
        %v325 = vld [vmem:[%s277 + $0x68] sm:$0xff]
        %v326 = vld [vmem:[%s277 + $0x70] sm:$0xff]
        %v327 = vld [vmem:[%s277 + $0x78] sm:$0xff]
        %v328 = vld [vmem:[%s277 + $0x80] sm:$0xff]
        %v329 = vld [vmem:[%s277 + $0x88] sm:$0xff]
        %v330 = vld [vmem:[%s277 + $0x90] sm:$0xff]
        %v331 = vld [vmem:[%s277 + $0x98] sm:$0xff]
        %v332 = vld [vmem:[%s277 + $0xa0] sm:$0xff]
        %v333 = vld [vmem:[%s277 + $0xa8] sm:$0xff]
        %v334 = vld [vmem:[%s277 + $0xb0] sm:$0xff]
        %v335 = vld [vmem:[%s277 + $0xb8] sm:$0xff]
        %v336 = vld [vmem:[%s277 + $0xc0] sm:$0xff]
        %v337 = vld [vmem:[%s277 + $0xc8] sm:$0xff]
        %v338 = vld [vmem:[%s277 + $0xd0] sm:$0xff]
        %v339 = vld [vmem:[%s277 + $0xd8] sm:$0xff]
        %v340 = vld [vmem:[%s277 + $0xe0] sm:$0xff]
        %v341 = vld [vmem:[%s277 + $0xe8] sm:$0xff]
        %v342 = vld [vmem:[%s277 + $0xf0] sm:$0xff]
        %v343 = vld [vmem:[%s277 + $0xf8] sm:$0xff]
        %v344 = vld [vmem:[%s277 + $0x100] sm:$0xff]
        %v345 = vld [vmem:[%s277 + $0x108] sm:$0xff]
        %v346 = vld [vmem:[%s277 + $0x110] sm:$0xff]
        %v347 = vld [vmem:[%s277 + $0x118] sm:$0xff]
        %v348 = vld [vmem:[%s277 + $0x120] sm:$0xff]
        %v349 = vld [vmem:[%s277 + $0x128] sm:$0xff]
        %v350 = vld [vmem:[%s277 + $0x130] sm:$0xff]
        %v351 = vld [vmem:[%s277 + $0x138] sm:$0xff]
        %v352 = vld [vmem:[%s277 + $0x140] sm:$0xff]
        %v353 = vld [vmem:[%s277 + $0x148] sm:$0xff]
        %v354 = vld [vmem:[%s277 + $0x150] sm:$0xff]
        %v355 = vld [vmem:[%s277 + $0x158] sm:$0xff]
        %v356 = vld [vmem:[%s277 + $0x160] sm:$0xff]
        %v357 = vld [vmem:[%s277 + $0x168] sm:$0xff]
        %v358 = vld [vmem:[%s277 + $0x170] sm:$0xff]
        %v359 = vld [vmem:[%s277 + $0x178] sm:$0xff]
        %v360 = vld [vmem:[%s277 + $0x180] sm:$0xff]
        %v361 = vld [vmem:[%s277 + $0x188] sm:$0xff]
        %v362 = vld [vmem:[%s277 + $0x190] sm:$0xff]
        %v363 = vld [vmem:[%s277 + $0x198] sm:$0xff]
        %v364 = vld [vmem:[%s277 + $0x1a0] sm:$0xff]
        %v365 = vld [vmem:[%s277 + $0x1a8] sm:$0xff]
        %v366 = vld [vmem:[%s277 + $0x1b0] sm:$0xff]
        %v367 = vld [vmem:[%s277 + $0x1b8] sm:$0xff]
        %v368 = vld [vmem:[%s277 + $0x1c0] sm:$0xff]
        %v369 = vld [vmem:[%s277 + $0x1c8] sm:$0xff]
        %v370 = vld [vmem:[%s277 + $0x1d0] sm:$0xff]
        %v371 = vld [vmem:[%s277 + $0x1d8] sm:$0xff]
        %v372 = vld [vmem:[%s277 + $0x1e0] sm:$0xff]
        %v373 = vld [vmem:[%s277 + $0x1e8] sm:$0xff]
        %v374 = vld [vmem:[%s277 + $0x1f0] sm:$0xff]
        %v375 = vld [vmem:[%s277 + $0x1f8] sm:$0xff]
        %v376 = vld [vmem:[%s277 + $0x200] sm:$0xff]
        %v377 = vld [vmem:[%s277 + $0x208] sm:$0xff]
        %v378 = vld [vmem:[%s277 + $0x210] sm:$0xff]
        %v379 = vld [vmem:[%s277 + $0x218] sm:$0xff]
        %v380 = vld [vmem:[%s277 + $0x220] sm:$0xff]
        %v381 = vld [vmem:[%s277 + $0x228] sm:$0xff]
        %v382 = vld [vmem:[%s277 + $0x230] sm:$0xff]
        %v383 = vld [vmem:[%s277 + $0x238] sm:$0xff]
        %v384 = vld [vmem:[%s277 + $0x240] sm:$0xff]
        %v385 = vld [vmem:[%s277 + $0x248] sm:$0xff]
        %v386 = vld [vmem:[%s277 + $0x250] sm:$0xff]
        %v387 = vld [vmem:[%s277 + $0x258] sm:$0xff]
        %v388 = vld [vmem:[%s277 + $0x260] sm:$0xff]
        %v389 = vld [vmem:[%s277 + $0x268] sm:$0xff]
        %v390 = vld [vmem:[%s277 + $0x270] sm:$0xff]
        %v391 = vld [vmem:[%s277 + $0x278] sm:$0xff]
        %v392 = vld [vmem:[%s277 + $0x280] sm:$0xff]
        %v393 = vld [vmem:[%s277 + $0x288] sm:$0xff]
        %v394 = vld [vmem:[%s277 + $0x290] sm:$0xff]
        %v395 = vld [vmem:[%s277 + $0x298] sm:$0xff]
        %v396 = vld [vmem:[%s277 + $0x2a0] sm:$0xff]
        %v397 = vld [vmem:[%s277 + $0x2a8] sm:$0xff]
        %v398 = vld [vmem:[%s277 + $0x2b0] sm:$0xff]
        %v399 = vld [vmem:[%s277 + $0x2b8] sm:$0xff]
        %v400 = vld [vmem:[#allocation5] sm:$0xff]
        %v401 = vld [vmem:[#allocation5 + $0x8] sm:$0xff]
        %v402 = vld [vmem:[#allocation5 + $0x10] sm:$0xff]
        %v403 = vld [vmem:[#allocation5 + $0x18] sm:$0xff]
        %v404 = vld [vmem:[#allocation5 + $0x20] sm:$0xff]
        %v405 = vld [vmem:[#allocation5 + $0x28] sm:$0xff]
        %v406 = vld [vmem:[#allocation5 + $0x30] sm:$0xff]
        %v407 = vld [vmem:[#allocation5 + $0x38] sm:$0xff]
        %v408 = vld [vmem:[#allocation5 + $0x40] sm:$0xff]
        %v409 = vld [vmem:[#allocation5 + $0x48] sm:$0xff]
        %v410 = vld [vmem:[#allocation5 + $0x50] sm:$0xff]
        %v411 = vld [vmem:[#allocation5 + $0x58] sm:$0xff]
        %v412 = vld [vmem:[#allocation5 + $0x60] sm:$0xff]
        %v413 = vld [vmem:[#allocation5 + $0x68] sm:$0xff]
        %v414 = vld [vmem:[#allocation5 + $0x70] sm:$0xff]
        %v415 = vld [vmem:[#allocation5 + $0x78] sm:$0xff]
        %v416 = vld [vmem:[#allocation5 + $0x80] sm:$0xff]
        %v417 = vld [vmem:[#allocation5 + $0x88] sm:$0xff]
        %v418 = vld [vmem:[#allocation5 + $0x90] sm:$0xff]
        %v419 = vld [vmem:[#allocation5 + $0x98] sm:$0xff]
        %v420 = vld [vmem:[#allocation5 + $0xa0] sm:$0xff]
        %v421 = vld [vmem:[#allocation5 + $0xa8] sm:$0xff]
        %v422 = vld [vmem:[#allocation5 + $0xb0] sm:$0xff]
        %v423 = vld [vmem:[#allocation5 + $0xb8] sm:$0xff]
        %v424 = vld [vmem:[#allocation5 + $0xc0] sm:$0xff]
        %v425 = vld [vmem:[#allocation5 + $0xc8] sm:$0xff]
        %v426 = vld [vmem:[#allocation5 + $0xd0] sm:$0xff]
        %v427 = vld [vmem:[#allocation5 + $0xd8] sm:$0xff]
        %v428 = vld [vmem:[#allocation5 + $0xe0] sm:$0xff]
        %v429 = vld [vmem:[#allocation5 + $0xe8] sm:$0xff]
        %v430 = vld [vmem:[#allocation5 + $0xf0] sm:$0xff]
        %v431 = vld [vmem:[#allocation5 + $0xf8] sm:$0xff]
        %v432 = vld [vmem:[#allocation5 + $0x100] sm:$0xff]
        %v433 = vld [vmem:[#allocation5 + $0x108] sm:$0xff]
        %v434 = vld [vmem:[#allocation5 + $0x110] sm:$0xff]
        %v435 = vld [vmem:[#allocation5 + $0x118] sm:$0xff]
        %v436 = vld [vmem:[#allocation5 + $0x120] sm:$0xff]
        %v437 = vld [vmem:[#allocation5 + $0x128] sm:$0xff]
        %v438 = vld [vmem:[#allocation5 + $0x130] sm:$0xff]
        %v439 = vld [vmem:[#allocation5 + $0x138] sm:$0xff]
        %v440 = vld [vmem:[#allocation5 + $0x140] sm:$0xff]
        %v441 = vld [vmem:[#allocation5 + $0x148] sm:$0xff]
        %v442 = vld [vmem:[#allocation5 + $0x150] sm:$0xff]
        %v443 = vld [vmem:[#allocation5 + $0x158] sm:$0xff]
        %v444 = vld [vmem:[#allocation5 + $0x160] sm:$0xff]
        %v445 = vld [vmem:[#allocation5 + $0x168] sm:$0xff]
        %v446 = vld [vmem:[#allocation5 + $0x170] sm:$0xff]
        %v447 = vld [vmem:[#allocation5 + $0x178] sm:$0xff]
        %v448 = vld [vmem:[#allocation5 + $0x180] sm:$0xff]
        %v449 = vld [vmem:[#allocation5 + $0x188] sm:$0xff]
        %v450 = vld [vmem:[#allocation5 + $0x190] sm:$0xff]
        %v451 = vld [vmem:[#allocation5 + $0x198] sm:$0xff]
        %v452 = vld [vmem:[#allocation5 + $0x1a0] sm:$0xff]
        %v453 = vld [vmem:[#allocation5 + $0x1a8] sm:$0xff]
        %v454 = vld [vmem:[#allocation5 + $0x1b0] sm:$0xff]
        %v455 = vld [vmem:[#allocation5 + $0x1b8] sm:$0xff]
        %v456 = vld [vmem:[#allocation5 + $0x1c0] sm:$0xff]
        %v457 = vld [vmem:[#allocation5 + $0x1c8] sm:$0xff]
        %v458 = vld [vmem:[#allocation5 + $0x1d0] sm:$0xff]
        %v459 = vld [vmem:[#allocation5 + $0x1d8] sm:$0xff]
        %v460 = vld [vmem:[#allocation5 + $0x1e0] sm:$0xff]
        %v461 = vld [vmem:[#allocation5 + $0x1e8] sm:$0xff]
        %v462 = vld [vmem:[#allocation5 + $0x1f0] sm:$0xff]
        %v463 = vld [vmem:[#allocation5 + $0x1f8] sm:$0xff]
        %v464 = vld [vmem:[#allocation5 + $0x200] sm:$0xff]
        %v465 = vld [vmem:[#allocation5 + $0x208] sm:$0xff]
        %v466 = vld [vmem:[#allocation5 + $0x210] sm:$0xff]
        %v467 = vld [vmem:[#allocation5 + $0x218] sm:$0xff]
        %v468 = vld [vmem:[#allocation5 + $0x220] sm:$0xff]
        %v469 = vld [vmem:[#allocation5 + $0x228] sm:$0xff]
        %v470 = vld [vmem:[#allocation5 + $0x230] sm:$0xff]
        %v471 = vld [vmem:[#allocation5 + $0x238] sm:$0xff]
        %v472 = vld [vmem:[#allocation5 + $0x240] sm:$0xff]
        %v473 = vld [vmem:[#allocation5 + $0x248] sm:$0xff]
        %v474 = vld [vmem:[#allocation5 + $0x250] sm:$0xff]
        %v475 = vld [vmem:[#allocation5 + $0x258] sm:$0xff]
        %v476 = vld [vmem:[#allocation5 + $0x260] sm:$0xff]
        %v477 = vld [vmem:[#allocation5 + $0x268] sm:$0xff]
        %v478 = vld [vmem:[#allocation5 + $0x270] sm:$0xff]
        %v479 = vld [vmem:[#allocation5 + $0x278] sm:$0xff]
        %v480 = vld [vmem:[#allocation5 + $0x280] sm:$0xff]
        %v481 = vld [vmem:[#allocation5 + $0x288] sm:$0xff]
        %v482 = vld [vmem:[#allocation5 + $0x290] sm:$0xff]
        %v483 = vld [vmem:[#allocation5 + $0x298] sm:$0xff]
        %v484 = vld [vmem:[#allocation5 + $0x2a0] sm:$0xff]
        %v485 = vld [vmem:[#allocation5 + $0x2a8] sm:$0xff]
        %v486 = vld [vmem:[#allocation5 + $0x2b0] sm:$0xff]
        %v487 = vld [vmem:[#allocation5 + $0x2b8] sm:$0xff]
        %v488 = vld [vmem:[#allocation5 + $0x2c0] sm:$0xff]
        %v489 = vld [vmem:[#allocation5 + $0x2c8] sm:$0xff]
        %v490 = vld [vmem:[#allocation5 + $0x2d0] sm:$0xff]
        %v491 = vld [vmem:[#allocation5 + $0x2d8] sm:$0xff]
        %v492 = vld [vmem:[#allocation5 + $0x2e0] sm:$0xff]
        %v493 = vld [vmem:[#allocation5 + $0x2e8] sm:$0xff]
        %v494 = vld [vmem:[#allocation5 + $0x2f0] sm:$0xff]
        %v495 = vld [vmem:[#allocation5 + $0x2f8] sm:$0xff]
        %v496 = vld [vmem:[#allocation5 + $0x300] sm:$0xff]
        %v497 = vld [vmem:[#allocation5 + $0x308] sm:$0xff]
        %v498 = vld [vmem:[#allocation5 + $0x310] sm:$0xff]
        %v499 = vld [vmem:[#allocation5 + $0x318] sm:$0xff]
        %v500 = vld [vmem:[#allocation5 + $0x320] sm:$0xff]
        %v501 = vld [vmem:[#allocation5 + $0x328] sm:$0xff]
        %v502 = vld [vmem:[#allocation5 + $0x330] sm:$0xff]
        %v503 = vld [vmem:[#allocation5 + $0x338] sm:$0xff]
        %v504 = vld [vmem:[#allocation5 + $0x340] sm:$0xff]
        %v505 = vld [vmem:[#allocation5 + $0x348] sm:$0xff]
        %v506 = vld [vmem:[#allocation5 + $0x350] sm:$0xff]
        %v507 = vld [vmem:[#allocation5 + $0x358] sm:$0xff]
        %v508 = vld [vmem:[#allocation5 + $0x360] sm:$0xff]
        %v509 = vld [vmem:[#allocation5 + $0x368] sm:$0xff]
        %v510 = vld [vmem:[#allocation5 + $0x370] sm:$0xff]
        %v511 = vld [vmem:[#allocation5 + $0x378] sm:$0xff]
        %v512 = vld [vmem:[#allocation5 + $0x380] sm:$0xff]
        %v513 = vld [vmem:[#allocation5 + $0x388] sm:$0xff]
        %v514 = vld [vmem:[#allocation5 + $0x390] sm:$0xff]
        %v515 = vld [vmem:[#allocation5 + $0x398] sm:$0xff]
        %v516 = vld [vmem:[#allocation5 + $0x3a0] sm:$0xff]
        %v517 = vld [vmem:[#allocation5 + $0x3a8] sm:$0xff]
        %v518 = vld [vmem:[#allocation5 + $0x3b0] sm:$0xff]
        %v519 = vld [vmem:[#allocation5 + $0x3b8] sm:$0xff]
        %v520 = vld [vmem:[#allocation5 + $0x3c0] sm:$0xff]
        %v521 = vld [vmem:[#allocation5 + $0x3c8] sm:$0xff]
        %v522 = vld [vmem:[#allocation5 + $0x3d0] sm:$0xff]
        %v523 = vld [vmem:[#allocation5 + $0x3d8] sm:$0xff]
        %v524 = vld [vmem:[#allocation5 + $0x3e0] sm:$0xff]
        %v525 = vld [vmem:[#allocation5 + $0x3e8] sm:$0xff]
        %v526 = vld [vmem:[#allocation5 + $0x3f0] sm:$0xff]
        %v527 = vld [vmem:[#allocation5 + $0x3f8] sm:$0xff]
        %v528 = vld [vmem:[#allocation5 + $0x400] sm:$0xff]
        %v529 = vld [vmem:[#allocation5 + $0x408] sm:$0xff]
        %v530 = vld [vmem:[#allocation5 + $0x410] sm:$0xff]
        %v531 = vld [vmem:[#allocation5 + $0x418] sm:$0xff]
        %v532 = vld [vmem:[#allocation5 + $0x420] sm:$0xff]
        %v533 = vld [vmem:[#allocation5 + $0x428] sm:$0xff]
        %v534 = vld [vmem:[#allocation5 + $0x430] sm:$0xff]
        %v535 = vld [vmem:[#allocation5 + $0x438] sm:$0xff]
        %v536 = vld [vmem:[#allocation5 + $0x440] sm:$0xff]
        %v537 = vld [vmem:[#allocation5 + $0x448] sm:$0xff]
        %v538 = vld [vmem:[#allocation5 + $0x450] sm:$0xff]
        %v539 = vld [vmem:[#allocation5 + $0x458] sm:$0xff]
        %v540 = vld [vmem:[#allocation5 + $0x460] sm:$0xff]
        %v541 = vld [vmem:[#allocation5 + $0x468] sm:$0xff]
        %v542 = vld [vmem:[#allocation5 + $0x470] sm:$0xff]
        %v543 = vld [vmem:[#allocation5 + $0x478] sm:$0xff]
        %v544 = vld [vmem:[#allocation5 + $0x480] sm:$0xff]
        %v545 = vld [vmem:[#allocation5 + $0x488] sm:$0xff]
        %v546 = vld [vmem:[#allocation5 + $0x490] sm:$0xff]
        %v547 = vld [vmem:[#allocation5 + $0x498] sm:$0xff]
        %v548 = vld [vmem:[#allocation5 + $0x4a0] sm:$0xff]
        %v549 = vld [vmem:[#allocation5 + $0x4a8] sm:$0xff]
        %v550 = vld [vmem:[#allocation5 + $0x4b0] sm:$0xff]
        %v551 = vld [vmem:[#allocation5 + $0x4b8] sm:$0xff]
        %v552 = vld [vmem:[#allocation5 + $0x4c0] sm:$0xff]
        %v553 = vld [vmem:[#allocation5 + $0x4c8] sm:$0xff]
        %v554 = vld [vmem:[#allocation5 + $0x4d0] sm:$0xff]
        %v555 = vld [vmem:[#allocation5 + $0x4d8] sm:$0xff]
        %v556 = vld [vmem:[#allocation5 + $0x4e0] sm:$0xff]
        %v557 = vld [vmem:[#allocation5 + $0x4e8] sm:$0xff]
        %v558 = vld [vmem:[#allocation5 + $0x4f0] sm:$0xff]
        %v559 = vld [vmem:[#allocation5 + $0x4f8] sm:$0xff]
        %v560 = vld [vmem:[#allocation5 + $0x500] sm:$0xff]
        %v561 = vld [vmem:[#allocation5 + $0x508] sm:$0xff]
        %vm562 = vcmask 130048
        %v564 = vsel %vm562, %v322, 0
        %v567 = vsel %vm562, %v333, 0
        %v570 = vsel %vm562, %v344, 0
        %v573 = vsel %vm562, %v355, 0
        %v576 = vsel %vm562, %v366, 0
        %v579 = vsel %vm562, %v377, 0
        %v582 = vsel %vm562, %v388, 0
        %v585 = vsel %vm562, %v399, 0
        %587 = vmatprep.subr.mxu0 0.0
        %588 = vmatpush1.msra.mxu0 %v415
        %589 = vmatprep.subr.mxu0 0.0
        %590 = vmatpush1.msra.mxu0 %v414
        %591 = vmatprep.subr.mxu0 0.0
        %592 = vmatpush1.msra.mxu0 %v413
        %593 = vmatprep.subr.mxu0 0.0
        %594 = vmatpush1.msra.mxu0 %v412
        %595 = vmatprep.subr.mxu0 0.0
        %596 = vmatpush1.msra.mxu0 %v411
        %597 = vmatprep.subr.mxu0 0.0
        %598 = vmatpush1.msra.mxu0 %v410
        %599 = vmatprep.subr.mxu0 0.0
        %600 = vmatpush1.msra.mxu0 %v409
        %601 = vmatprep.subr.mxu0 0.0
        %602 = vmatpush1.msra.mxu0 %v408
        %603 = vmatprep.subr.mxu0 0.0
        %604 = vmatpush1.msra.mxu0 %v407
        %605 = vmatprep.subr.mxu0 0.0
        %606 = vmatpush1.msra.mxu0 %v406
        %607 = vmatprep.subr.mxu0 0.0
        %608 = vmatpush1.msra.mxu0 %v405
        %609 = vmatprep.subr.mxu0 0.0
        %610 = vmatpush1.msra.mxu0 %v404
        %611 = vmatprep.subr.mxu0 0.0
        %612 = vmatpush1.msra.mxu0 %v403
        %613 = vmatprep.subr.mxu0 0.0
        %614 = vmatpush1.msra.mxu0 %v402
        %615 = vmatprep.subr.mxu0 0.0
        %616 = vmatpush1.msra.mxu0 %v401
        %617 = vmatprep.subr.mxu0 0.0
        %618 = vmatpush1.msra.mxu0 %v400
        %619 = vmatprep.subr.mxu0 0.0
        %620 = vmatpush2.msra.mxu0 %v431
        %621 = vmatprep.subr.mxu0 0.0
        %622 = vmatpush2.msra.mxu0 %v430
        %623 = vmatprep.subr.mxu0 0.0
        %624 = vmatpush2.msra.mxu0 %v429
        %625 = vmatprep.subr.mxu0 0.0
        %626 = vmatpush2.msra.mxu0 %v428
        %627 = vmatprep.subr.mxu0 0.0
        %628 = vmatpush2.msra.mxu0 %v427
        %629 = vmatprep.subr.mxu0 0.0
        %630 = vmatpush2.msra.mxu0 %v426
        %631 = vmatprep.subr.mxu0 0.0
        %632 = vmatpush2.msra.mxu0 %v425
        %633 = vmatprep.subr.mxu0 0.0
        %634 = vmatpush2.msra.mxu0 %v424
        %635 = vmatprep.subr.mxu0 0.0
        %636 = vmatpush2.msra.mxu0 %v423
        %637 = vmatprep.subr.mxu0 0.0
        %638 = vmatpush2.msra.mxu0 %v422
        %639 = vmatprep.subr.mxu0 0.0
        %640 = vmatpush2.msra.mxu0 %v421
        %641 = vmatprep.subr.mxu0 0.0
        %642 = vmatpush2.msra.mxu0 %v420
        %643 = vmatprep.subr.mxu0 0.0
        %644 = vmatpush2.msra.mxu0 %v419
        %645 = vmatprep.subr.mxu0 0.0
        %646 = vmatpush2.msra.mxu0 %v418
        %647 = vmatprep.subr.mxu0 0.0
        %648 = vmatpush2.msra.mxu0 %v417
        %649 = vmatprep.subr.mxu0 0.0
        %650 = vmatpush2.msra.mxu0 %v416
        %651 = vmatprep.mubr.f32.mxu0 %v313
        %652 = vmatmul.mubr.f32.gmra.mxu0 %v312
        %v653 = vpop.f32.mrf.mxu0
        %v654 = vadd.f32 0.0, %v653
        %v655 = vpop.f32.mrf.mxu0
        %656 = vmatprep.mubr.f32.mxu0 %v324
        %657 = vmatmul.mubr.f32.gmra.mxu0 %v323
        %v658 = vpop.f32.mrf.mxu0
        %v659 = vadd.f32 0.0, %v658
        %v660 = vpop.f32.mrf.mxu0
        %661 = vmatprep.mubr.f32.mxu0 %v335
        %662 = vmatmul.mubr.f32.gmra.mxu0 %v334
        %v663 = vpop.f32.mrf.mxu0
        %v664 = vadd.f32 0.0, %v663
        %v665 = vpop.f32.mrf.mxu0
        %666 = vmatprep.mubr.f32.mxu0 %v346
        %667 = vmatmul.mubr.f32.gmra.mxu0 %v345
        %v668 = vpop.f32.mrf.mxu0
        %v669 = vadd.f32 0.0, %v668
        %v670 = vpop.f32.mrf.mxu0
        %671 = vmatprep.mubr.f32.mxu0 %v357
        %672 = vmatmul.mubr.f32.gmra.mxu0 %v356
        %v673 = vpop.f32.mrf.mxu0
        %v674 = vadd.f32 0.0, %v673
        %v675 = vpop.f32.mrf.mxu0
        %676 = vmatprep.mubr.f32.mxu0 %v368
        %677 = vmatmul.mubr.f32.gmra.mxu0 %v367
        %v678 = vpop.f32.mrf.mxu0
        %v679 = vadd.f32 0.0, %v678
        %v680 = vpop.f32.mrf.mxu0
        %681 = vmatprep.mubr.f32.mxu0 %v379
        %682 = vmatmul.mubr.f32.gmra.mxu0 %v378
        %v683 = vpop.f32.mrf.mxu0
        %v684 = vadd.f32 0.0, %v683
        %v685 = vpop.f32.mrf.mxu0
        %686 = vmatprep.mubr.f32.mxu0 %v390
        %687 = vmatmul.mubr.f32.gmra.mxu0 %v389
        %v688 = vpop.f32.mrf.mxu0
        %v689 = vadd.f32 0.0, %v688
        %v690 = vpop.f32.mrf.mxu0
        %691 = vdwg.mxu0
        %692 = vmatprep.subr.mxu0 0.0
        %693 = vmatpush1.msra.mxu0 %v447
        %694 = vmatprep.subr.mxu0 0.0
        %695 = vmatpush1.msra.mxu0 %v446
        %696 = vmatprep.subr.mxu0 0.0
        %697 = vmatpush1.msra.mxu0 %v445
        %698 = vmatprep.subr.mxu0 0.0
        %699 = vmatpush1.msra.mxu0 %v444
        %700 = vmatprep.subr.mxu0 0.0
        %701 = vmatpush1.msra.mxu0 %v443
        %702 = vmatprep.subr.mxu0 0.0
        %703 = vmatpush1.msra.mxu0 %v442
        %704 = vmatprep.subr.mxu0 0.0
        %705 = vmatpush1.msra.mxu0 %v441
        %706 = vmatprep.subr.mxu0 0.0
        %707 = vmatpush1.msra.mxu0 %v440
        %708 = vmatprep.subr.mxu0 0.0
        %709 = vmatpush1.msra.mxu0 %v439
        %710 = vmatprep.subr.mxu0 0.0
        %711 = vmatpush1.msra.mxu0 %v438
        %712 = vmatprep.subr.mxu0 0.0
        %713 = vmatpush1.msra.mxu0 %v437
        %714 = vmatprep.subr.mxu0 0.0
        %715 = vmatpush1.msra.mxu0 %v436
        %716 = vmatprep.subr.mxu0 0.0
        %717 = vmatpush1.msra.mxu0 %v435
        %718 = vmatprep.subr.mxu0 0.0
        %719 = vmatpush1.msra.mxu0 %v434
        %720 = vmatprep.subr.mxu0 0.0
        %721 = vmatpush1.msra.mxu0 %v433
        %722 = vmatprep.subr.mxu0 0.0
        %723 = vmatpush1.msra.mxu0 %v432
        %724 = vmatprep.subr.mxu0 0.0
        %725 = vmatpush2.msra.mxu0 %v463
        %726 = vmatprep.subr.mxu0 0.0
        %727 = vmatpush2.msra.mxu0 %v462
        %728 = vmatprep.subr.mxu0 0.0
        %729 = vmatpush2.msra.mxu0 %v461
        %730 = vmatprep.subr.mxu0 0.0
        %731 = vmatpush2.msra.mxu0 %v460
        %732 = vmatprep.subr.mxu0 0.0
        %733 = vmatpush2.msra.mxu0 %v459
        %734 = vmatprep.subr.mxu0 0.0
        %735 = vmatpush2.msra.mxu0 %v458
        %736 = vmatprep.subr.mxu0 0.0
        %737 = vmatpush2.msra.mxu0 %v457
        %738 = vmatprep.subr.mxu0 0.0
        %739 = vmatpush2.msra.mxu0 %v456
        %740 = vmatprep.subr.mxu0 0.0
        %741 = vmatpush2.msra.mxu0 %v455
        %742 = vmatprep.subr.mxu0 0.0
        %743 = vmatpush2.msra.mxu0 %v454
        %744 = vmatprep.subr.mxu0 0.0
        %745 = vmatpush2.msra.mxu0 %v453
        %746 = vmatprep.subr.mxu0 0.0
        %747 = vmatpush2.msra.mxu0 %v452
        %748 = vmatprep.subr.mxu0 0.0
        %749 = vmatpush2.msra.mxu0 %v451
        %750 = vmatprep.subr.mxu0 0.0
        %751 = vmatpush2.msra.mxu0 %v450
        %752 = vmatprep.subr.mxu0 0.0
        %753 = vmatpush2.msra.mxu0 %v449
        %754 = vmatprep.subr.mxu0 0.0
        %755 = vmatpush2.msra.mxu0 %v448
        %756 = vmatprep.mubr.f32.mxu0 %v315
        %757 = vmatmul.mubr.f32.gmra.mxu0 %v314
        %v758 = vpop.f32.mrf.mxu0
        %v759 = vadd.f32 %v654, %v758
        %v760 = vpop.f32.mrf.mxu0
        %761 = vmatprep.mubr.f32.mxu0 %v326
        %762 = vmatmul.mubr.f32.gmra.mxu0 %v325
        %v763 = vpop.f32.mrf.mxu0
        %v764 = vadd.f32 %v659, %v763
        %v765 = vpop.f32.mrf.mxu0
        %766 = vmatprep.mubr.f32.mxu0 %v337
        %767 = vmatmul.mubr.f32.gmra.mxu0 %v336
        %v768 = vpop.f32.mrf.mxu0
        %v769 = vadd.f32 %v664, %v768
        %v770 = vpop.f32.mrf.mxu0
        %771 = vmatprep.mubr.f32.mxu0 %v348
        %772 = vmatmul.mubr.f32.gmra.mxu0 %v347
        %v773 = vpop.f32.mrf.mxu0
        %v774 = vadd.f32 %v669, %v773
        %v775 = vpop.f32.mrf.mxu0
        %776 = vmatprep.mubr.f32.mxu0 %v359
        %777 = vmatmul.mubr.f32.gmra.mxu0 %v358
        %v778 = vpop.f32.mrf.mxu0
        %v779 = vadd.f32 %v674, %v778
        %v780 = vpop.f32.mrf.mxu0
        %781 = vmatprep.mubr.f32.mxu0 %v370
        %782 = vmatmul.mubr.f32.gmra.mxu0 %v369
        %v783 = vpop.f32.mrf.mxu0
        %v784 = vadd.f32 %v679, %v783
        %v785 = vpop.f32.mrf.mxu0
        %786 = vmatprep.mubr.f32.mxu0 %v381
        %787 = vmatmul.mubr.f32.gmra.mxu0 %v380
        %v788 = vpop.f32.mrf.mxu0
        %v789 = vadd.f32 %v684, %v788
        %v790 = vpop.f32.mrf.mxu0
        %791 = vmatprep.mubr.f32.mxu0 %v392
        %792 = vmatmul.mubr.f32.gmra.mxu0 %v391
        %v793 = vpop.f32.mrf.mxu0
        %v794 = vadd.f32 %v689, %v793
        %v795 = vpop.f32.mrf.mxu0
        %796 = vdwg.mxu0
        %797 = vmatprep.subr.mxu0 0.0
        %798 = vmatpush1.msra.mxu0 %v479
        %799 = vmatprep.subr.mxu0 0.0
        %800 = vmatpush1.msra.mxu0 %v478
        %801 = vmatprep.subr.mxu0 0.0
        %802 = vmatpush1.msra.mxu0 %v477
        %803 = vmatprep.subr.mxu0 0.0
        %804 = vmatpush1.msra.mxu0 %v476
        %805 = vmatprep.subr.mxu0 0.0
        %806 = vmatpush1.msra.mxu0 %v475
        %807 = vmatprep.subr.mxu0 0.0
        %808 = vmatpush1.msra.mxu0 %v474
        %809 = vmatprep.subr.mxu0 0.0
        %810 = vmatpush1.msra.mxu0 %v473
        %811 = vmatprep.subr.mxu0 0.0
        %812 = vmatpush1.msra.mxu0 %v472
        %813 = vmatprep.subr.mxu0 0.0
        %814 = vmatpush1.msra.mxu0 %v471
        %815 = vmatprep.subr.mxu0 0.0
        %816 = vmatpush1.msra.mxu0 %v470
        %817 = vmatprep.subr.mxu0 0.0
        %818 = vmatpush1.msra.mxu0 %v469
        %819 = vmatprep.subr.mxu0 0.0
        %820 = vmatpush1.msra.mxu0 %v468
        %821 = vmatprep.subr.mxu0 0.0
        %822 = vmatpush1.msra.mxu0 %v467
        %823 = vmatprep.subr.mxu0 0.0
        %824 = vmatpush1.msra.mxu0 %v466
        %825 = vmatprep.subr.mxu0 0.0
        %826 = vmatpush1.msra.mxu0 %v465
        %827 = vmatprep.subr.mxu0 0.0
        %828 = vmatpush1.msra.mxu0 %v464
        %829 = vmatprep.subr.mxu0 0.0
        %830 = vmatpush2.msra.mxu0 %v495
        %831 = vmatprep.subr.mxu0 0.0
        %832 = vmatpush2.msra.mxu0 %v494
        %833 = vmatprep.subr.mxu0 0.0
        %834 = vmatpush2.msra.mxu0 %v493
        %835 = vmatprep.subr.mxu0 0.0
        %836 = vmatpush2.msra.mxu0 %v492
        %837 = vmatprep.subr.mxu0 0.0
        %838 = vmatpush2.msra.mxu0 %v491
        %839 = vmatprep.subr.mxu0 0.0
        %840 = vmatpush2.msra.mxu0 %v490
        %841 = vmatprep.subr.mxu0 0.0
        %842 = vmatpush2.msra.mxu0 %v489
        %843 = vmatprep.subr.mxu0 0.0
        %844 = vmatpush2.msra.mxu0 %v488
        %845 = vmatprep.subr.mxu0 0.0
        %846 = vmatpush2.msra.mxu0 %v487
        %847 = vmatprep.subr.mxu0 0.0
        %848 = vmatpush2.msra.mxu0 %v486
        %849 = vmatprep.subr.mxu0 0.0
        %850 = vmatpush2.msra.mxu0 %v485
        %851 = vmatprep.subr.mxu0 0.0
        %852 = vmatpush2.msra.mxu0 %v484
        %853 = vmatprep.subr.mxu0 0.0
        %854 = vmatpush2.msra.mxu0 %v483
        %855 = vmatprep.subr.mxu0 0.0
        %856 = vmatpush2.msra.mxu0 %v482
        %857 = vmatprep.subr.mxu0 0.0
        %858 = vmatpush2.msra.mxu0 %v481
        %859 = vmatprep.subr.mxu0 0.0
        %860 = vmatpush2.msra.mxu0 %v480
        %861 = vmatprep.mubr.f32.mxu0 %v317
        %862 = vmatmul.mubr.f32.gmra.mxu0 %v316
        %v863 = vpop.f32.mrf.mxu0
        %v864 = vadd.f32 %v759, %v863
        %v865 = vpop.f32.mrf.mxu0
        %866 = vmatprep.mubr.f32.mxu0 %v328
        %867 = vmatmul.mubr.f32.gmra.mxu0 %v327
        %v868 = vpop.f32.mrf.mxu0
        %v869 = vadd.f32 %v764, %v868
        %v870 = vpop.f32.mrf.mxu0
        %871 = vmatprep.mubr.f32.mxu0 %v339
        %872 = vmatmul.mubr.f32.gmra.mxu0 %v338
        %v873 = vpop.f32.mrf.mxu0
        %v874 = vadd.f32 %v769, %v873
        %v875 = vpop.f32.mrf.mxu0
        %876 = vmatprep.mubr.f32.mxu0 %v350
        %877 = vmatmul.mubr.f32.gmra.mxu0 %v349
        %v878 = vpop.f32.mrf.mxu0
        %v879 = vadd.f32 %v774, %v878
        %v880 = vpop.f32.mrf.mxu0
        %881 = vmatprep.mubr.f32.mxu0 %v361
        %882 = vmatmul.mubr.f32.gmra.mxu0 %v360
        %v883 = vpop.f32.mrf.mxu0
        %v884 = vadd.f32 %v779, %v883
        %v885 = vpop.f32.mrf.mxu0
        %886 = vmatprep.mubr.f32.mxu0 %v372
        %887 = vmatmul.mubr.f32.gmra.mxu0 %v371
        %v888 = vpop.f32.mrf.mxu0
        %v889 = vadd.f32 %v784, %v888
        %v890 = vpop.f32.mrf.mxu0
        %891 = vmatprep.mubr.f32.mxu0 %v383
        %892 = vmatmul.mubr.f32.gmra.mxu0 %v382
        %v893 = vpop.f32.mrf.mxu0
        %v894 = vadd.f32 %v789, %v893
        %v895 = vpop.f32.mrf.mxu0
        %896 = vmatprep.mubr.f32.mxu0 %v394
        %897 = vmatmul.mubr.f32.gmra.mxu0 %v393
        %v898 = vpop.f32.mrf.mxu0
        %v899 = vadd.f32 %v794, %v898
        %v900 = vpop.f32.mrf.mxu0
        %901 = vdwg.mxu0
        %902 = vmatprep.subr.mxu0 0.0
        %903 = vmatpush1.msra.mxu0 %v511
        %904 = vmatprep.subr.mxu0 0.0
        %905 = vmatpush1.msra.mxu0 %v510
        %906 = vmatprep.subr.mxu0 0.0
        %907 = vmatpush1.msra.mxu0 %v509
        %908 = vmatprep.subr.mxu0 0.0
        %909 = vmatpush1.msra.mxu0 %v508
        %910 = vmatprep.subr.mxu0 0.0
        %911 = vmatpush1.msra.mxu0 %v507
        %912 = vmatprep.subr.mxu0 0.0
        %913 = vmatpush1.msra.mxu0 %v506
        %914 = vmatprep.subr.mxu0 0.0
        %915 = vmatpush1.msra.mxu0 %v505
        %916 = vmatprep.subr.mxu0 0.0
        %917 = vmatpush1.msra.mxu0 %v504
        %918 = vmatprep.subr.mxu0 0.0
        %919 = vmatpush1.msra.mxu0 %v503
        %920 = vmatprep.subr.mxu0 0.0
        %921 = vmatpush1.msra.mxu0 %v502
        %922 = vmatprep.subr.mxu0 0.0
        %923 = vmatpush1.msra.mxu0 %v501
        %924 = vmatprep.subr.mxu0 0.0
        %925 = vmatpush1.msra.mxu0 %v500
        %926 = vmatprep.subr.mxu0 0.0
        %927 = vmatpush1.msra.mxu0 %v499
        %928 = vmatprep.subr.mxu0 0.0
        %929 = vmatpush1.msra.mxu0 %v498
        %930 = vmatprep.subr.mxu0 0.0
        %931 = vmatpush1.msra.mxu0 %v497
        %932 = vmatprep.subr.mxu0 0.0
        %933 = vmatpush1.msra.mxu0 %v496
        %934 = vmatprep.subr.mxu0 0.0
        %935 = vmatpush2.msra.mxu0 %v527
        %936 = vmatprep.subr.mxu0 0.0
        %937 = vmatpush2.msra.mxu0 %v526
        %938 = vmatprep.subr.mxu0 0.0
        %939 = vmatpush2.msra.mxu0 %v525
        %940 = vmatprep.subr.mxu0 0.0
        %941 = vmatpush2.msra.mxu0 %v524
        %942 = vmatprep.subr.mxu0 0.0
        %943 = vmatpush2.msra.mxu0 %v523
        %944 = vmatprep.subr.mxu0 0.0
        %945 = vmatpush2.msra.mxu0 %v522
        %946 = vmatprep.subr.mxu0 0.0
        %947 = vmatpush2.msra.mxu0 %v521
        %948 = vmatprep.subr.mxu0 0.0
        %949 = vmatpush2.msra.mxu0 %v520
        %950 = vmatprep.subr.mxu0 0.0
        %951 = vmatpush2.msra.mxu0 %v519
        %952 = vmatprep.subr.mxu0 0.0
        %953 = vmatpush2.msra.mxu0 %v518
        %954 = vmatprep.subr.mxu0 0.0
        %955 = vmatpush2.msra.mxu0 %v517
        %956 = vmatprep.subr.mxu0 0.0
        %957 = vmatpush2.msra.mxu0 %v516
        %958 = vmatprep.subr.mxu0 0.0
        %959 = vmatpush2.msra.mxu0 %v515
        %960 = vmatprep.subr.mxu0 0.0
        %961 = vmatpush2.msra.mxu0 %v514
        %962 = vmatprep.subr.mxu0 0.0
        %963 = vmatpush2.msra.mxu0 %v513
        %964 = vmatprep.subr.mxu0 0.0
        %965 = vmatpush2.msra.mxu0 %v512
        %966 = vmatprep.mubr.f32.mxu0 %v319
        %967 = vmatmul.mubr.f32.gmra.mxu0 %v318
        %v968 = vpop.f32.mrf.mxu0
        %v969 = vadd.f32 %v864, %v968
        %v970 = vpop.f32.mrf.mxu0
        %971 = vmatprep.mubr.f32.mxu0 %v330
        %972 = vmatmul.mubr.f32.gmra.mxu0 %v329
        %v973 = vpop.f32.mrf.mxu0
        %v974 = vadd.f32 %v869, %v973
        %v975 = vpop.f32.mrf.mxu0
        %976 = vmatprep.mubr.f32.mxu0 %v341
        %977 = vmatmul.mubr.f32.gmra.mxu0 %v340
        %v978 = vpop.f32.mrf.mxu0
        %v979 = vadd.f32 %v874, %v978
        %v980 = vpop.f32.mrf.mxu0
        %981 = vmatprep.mubr.f32.mxu0 %v352
        %982 = vmatmul.mubr.f32.gmra.mxu0 %v351
        %v983 = vpop.f32.mrf.mxu0
        %v984 = vadd.f32 %v879, %v983
        %v985 = vpop.f32.mrf.mxu0
        %986 = vmatprep.mubr.f32.mxu0 %v363
        %987 = vmatmul.mubr.f32.gmra.mxu0 %v362
        %v988 = vpop.f32.mrf.mxu0
        %v989 = vadd.f32 %v884, %v988
        %v990 = vpop.f32.mrf.mxu0
        %991 = vmatprep.mubr.f32.mxu0 %v374
        %992 = vmatmul.mubr.f32.gmra.mxu0 %v373
        %v993 = vpop.f32.mrf.mxu0
        %v994 = vadd.f32 %v889, %v993
        %v995 = vpop.f32.mrf.mxu0
        %996 = vmatprep.mubr.f32.mxu0 %v385
        %997 = vmatmul.mubr.f32.gmra.mxu0 %v384
        %v998 = vpop.f32.mrf.mxu0
        %v999 = vadd.f32 %v894, %v998
        %v1000 = vpop.f32.mrf.mxu0
        %1001 = vmatprep.mubr.f32.mxu0 %v396
        %1002 = vmatmul.mubr.f32.gmra.mxu0 %v395
        %v1003 = vpop.f32.mrf.mxu0
        %v1004 = vadd.f32 %v899, %v1003
        %v1005 = vpop.f32.mrf.mxu0
        %1006 = vdwg.mxu0
        %1007 = vmatprep.subr.mxu0 0.0
        %1008 = vmatpush1.msra.mxu0 %v543
        %1009 = vmatprep.subr.mxu0 0.0
        %1010 = vmatpush1.msra.mxu0 %v542
        %1011 = vmatprep.subr.mxu0 0.0
        %1012 = vmatpush1.msra.mxu0 %v541
        %1013 = vmatprep.subr.mxu0 0.0
        %1014 = vmatpush1.msra.mxu0 %v540
        %1015 = vmatprep.subr.mxu0 0.0
        %1016 = vmatpush1.msra.mxu0 %v539
        %1017 = vmatprep.subr.mxu0 0.0
        %1018 = vmatpush1.msra.mxu0 %v538
        %1019 = vmatprep.subr.mxu0 0.0
        %1020 = vmatpush1.msra.mxu0 %v537
        %1021 = vmatprep.subr.mxu0 0.0
        %1022 = vmatpush1.msra.mxu0 %v536
        %1023 = vmatprep.subr.mxu0 0.0
        %1024 = vmatpush1.msra.mxu0 %v535
        %1025 = vmatprep.subr.mxu0 0.0
        %1026 = vmatpush1.msra.mxu0 %v534
        %1027 = vmatprep.subr.mxu0 0.0
        %1028 = vmatpush1.msra.mxu0 %v533
        %1029 = vmatprep.subr.mxu0 0.0
        %1030 = vmatpush1.msra.mxu0 %v532
        %1031 = vmatprep.subr.mxu0 0.0
        %1032 = vmatpush1.msra.mxu0 %v531
        %1033 = vmatprep.subr.mxu0 0.0
        %1034 = vmatpush1.msra.mxu0 %v530
        %1035 = vmatprep.subr.mxu0 0.0
        %1036 = vmatpush1.msra.mxu0 %v529
        %1037 = vmatprep.subr.mxu0 0.0
        %1038 = vmatpush1.msra.mxu0 %v528
        %1039 = vmatprep.subr.mxu0 0.0
        %1040 = vmatpush2.msra.mxu0 %v559
        %1041 = vmatprep.subr.mxu0 0.0
        %1042 = vmatpush2.msra.mxu0 %v558
        %1043 = vmatprep.subr.mxu0 0.0
        %1044 = vmatpush2.msra.mxu0 %v557
        %1045 = vmatprep.subr.mxu0 0.0
        %1046 = vmatpush2.msra.mxu0 %v556
        %1047 = vmatprep.subr.mxu0 0.0
        %1048 = vmatpush2.msra.mxu0 %v555
        %1049 = vmatprep.subr.mxu0 0.0
        %1050 = vmatpush2.msra.mxu0 %v554
        %1051 = vmatprep.subr.mxu0 0.0
        %1052 = vmatpush2.msra.mxu0 %v553
        %1053 = vmatprep.subr.mxu0 0.0
        %1054 = vmatpush2.msra.mxu0 %v552
        %1055 = vmatprep.subr.mxu0 0.0
        %1056 = vmatpush2.msra.mxu0 %v551
        %1057 = vmatprep.subr.mxu0 0.0
        %1058 = vmatpush2.msra.mxu0 %v550
        %1059 = vmatprep.subr.mxu0 0.0
        %1060 = vmatpush2.msra.mxu0 %v549
        %1061 = vmatprep.subr.mxu0 0.0
        %1062 = vmatpush2.msra.mxu0 %v548
        %1063 = vmatprep.subr.mxu0 0.0
        %1064 = vmatpush2.msra.mxu0 %v547
        %1065 = vmatprep.subr.mxu0 0.0
        %1066 = vmatpush2.msra.mxu0 %v546
        %1067 = vmatprep.subr.mxu0 0.0
        %1068 = vmatpush2.msra.mxu0 %v545
        %1069 = vmatprep.subr.mxu0 0.0
        %1070 = vmatpush2.msra.mxu0 %v544
        %1071 = vmatprep.mubr.f32.mxu0 %v321
        %1072 = vmatmul.mubr.f32.gmra.mxu0 %v320
        %v1073 = vpop.f32.mrf.mxu0
        %v1074 = vadd.f32 %v969, %v1073
        %v1075 = vpop.f32.mrf.mxu0
        %1076 = vmatprep.mubr.f32.mxu0 %v332
        %1077 = vmatmul.mubr.f32.gmra.mxu0 %v331
        %v1078 = vpop.f32.mrf.mxu0
        %v1079 = vadd.f32 %v974, %v1078
        %v1080 = vpop.f32.mrf.mxu0
        %1081 = vmatprep.mubr.f32.mxu0 %v343
        %1082 = vmatmul.mubr.f32.gmra.mxu0 %v342
        %v1083 = vpop.f32.mrf.mxu0
        %v1084 = vadd.f32 %v979, %v1083
        %v1085 = vpop.f32.mrf.mxu0
        %1086 = vmatprep.mubr.f32.mxu0 %v354
        %1087 = vmatmul.mubr.f32.gmra.mxu0 %v353
        %v1088 = vpop.f32.mrf.mxu0
        %v1089 = vadd.f32 %v984, %v1088
        %v1090 = vpop.f32.mrf.mxu0
        %1091 = vmatprep.mubr.f32.mxu0 %v365
        %1092 = vmatmul.mubr.f32.gmra.mxu0 %v364
        %v1093 = vpop.f32.mrf.mxu0
        %v1094 = vadd.f32 %v989, %v1093
        %v1095 = vpop.f32.mrf.mxu0
        %1096 = vmatprep.mubr.f32.mxu0 %v376
        %1097 = vmatmul.mubr.f32.gmra.mxu0 %v375
        %v1098 = vpop.f32.mrf.mxu0
        %v1099 = vadd.f32 %v994, %v1098
        %v1100 = vpop.f32.mrf.mxu0
        %1101 = vmatprep.mubr.f32.mxu0 %v387
        %1102 = vmatmul.mubr.f32.gmra.mxu0 %v386
        %v1103 = vpop.f32.mrf.mxu0
        %v1104 = vadd.f32 %v999, %v1103
        %v1105 = vpop.f32.mrf.mxu0
        %1106 = vmatprep.mubr.f32.mxu0 %v398
        %1107 = vmatmul.mubr.f32.gmra.mxu0 %v397
        %v1108 = vpop.f32.mrf.mxu0
        %v1109 = vadd.f32 %v1004, %v1108
        %v1110 = vpop.f32.mrf.mxu0
        %1111 = vdwg.mxu0
        %1112 = vmatprep.subr.mxu0 0.0
        %1113 = vmatpush1.msra.mxu0 0.0
        %1114 = vmatprep.subr.mxu0 0.0
        %1115 = vmatpush1.msra.mxu0 0.0
        %1116 = vmatprep.subr.mxu0 0.0
        %1117 = vmatpush1.msra.mxu0 0.0
        %1118 = vmatprep.subr.mxu0 0.0
        %1119 = vmatpush1.msra.mxu0 0.0
        %1120 = vmatprep.subr.mxu0 0.0
        %1121 = vmatpush1.msra.mxu0 0.0
        %1122 = vmatprep.subr.mxu0 0.0
        %1123 = vmatpush1.msra.mxu0 0.0
        %1124 = vmatprep.subr.mxu0 0.0
        %1125 = vmatpush1.msra.mxu0 0.0
        %1126 = vmatprep.subr.mxu0 0.0
        %1127 = vmatpush1.msra.mxu0 0.0
        %1128 = vmatprep.subr.mxu0 0.0
        %1129 = vmatpush1.msra.mxu0 0.0
        %1130 = vmatprep.subr.mxu0 0.0
        %1131 = vmatpush1.msra.mxu0 0.0
        %1132 = vmatprep.subr.mxu0 0.0
        %1133 = vmatpush1.msra.mxu0 0.0
        %1134 = vmatprep.subr.mxu0 0.0
        %1135 = vmatpush1.msra.mxu0 0.0
        %1136 = vmatprep.subr.mxu0 0.0
        %1137 = vmatpush1.msra.mxu0 0.0
        %1138 = vmatprep.subr.mxu0 0.0
        %1139 = vmatpush1.msra.mxu0 0.0
        %1140 = vmatprep.subr.mxu0 0.0
        %1141 = vmatpush1.msra.mxu0 %v561
        %1142 = vmatprep.subr.mxu0 0.0
        %1143 = vmatpush1.msra.mxu0 %v560
        %1144 = vmatprep.subr.mxu0 0.0
        %1145 = vmatpush2.msra.mxu0 0.0
        %1146 = vmatprep.subr.mxu0 0.0
        %1147 = vmatpush2.msra.mxu0 0.0
        %1148 = vmatprep.subr.mxu0 0.0
        %1149 = vmatpush2.msra.mxu0 0.0
        %1150 = vmatprep.subr.mxu0 0.0
        %1151 = vmatpush2.msra.mxu0 0.0
        %1152 = vmatprep.subr.mxu0 0.0
        %1153 = vmatpush2.msra.mxu0 0.0
        %1154 = vmatprep.subr.mxu0 0.0
        %1155 = vmatpush2.msra.mxu0 0.0
        %1156 = vmatprep.subr.mxu0 0.0
        %1157 = vmatpush2.msra.mxu0 0.0
        %1158 = vmatprep.subr.mxu0 0.0
        %1159 = vmatpush2.msra.mxu0 0.0
        %1160 = vmatprep.subr.mxu0 0.0
        %1161 = vmatpush2.msra.mxu0 0.0
        %1162 = vmatprep.subr.mxu0 0.0
        %1163 = vmatpush2.msra.mxu0 0.0
        %1164 = vmatprep.subr.mxu0 0.0
        %1165 = vmatpush2.msra.mxu0 0.0
        %1166 = vmatprep.subr.mxu0 0.0
        %1167 = vmatpush2.msra.mxu0 0.0
        %1168 = vmatprep.subr.mxu0 0.0
        %1169 = vmatpush2.msra.mxu0 0.0
        %1170 = vmatprep.subr.mxu0 0.0
        %1171 = vmatpush2.msra.mxu0 0.0
        %1172 = vmatprep.subr.mxu0 0.0
        %1173 = vmatpush2.msra.mxu0 0.0
        %1174 = vmatprep.subr.mxu0 0.0
        %1175 = vmatpush2.msra.mxu0 0.0
        %1176 = vmatprep.mubr.f32.mxu0 0.0
        %1177 = vmatmul.mubr.f32.gmra.mxu0 %v564
        %v1178 = vpop.f32.mrf.mxu0
        %v1179 = vadd.f32 %v1074, %v1178
        %v1180 = vpop.f32.mrf.mxu0
        %1181 = vmatprep.mubr.f32.mxu0 0.0
        %1182 = vmatmul.mubr.f32.gmra.mxu0 %v567
        %v1183 = vpop.f32.mrf.mxu0
        %v1184 = vadd.f32 %v1079, %v1183
        %v1185 = vpop.f32.mrf.mxu0
        %1186 = vmatprep.mubr.f32.mxu0 0.0
        %1187 = vmatmul.mubr.f32.gmra.mxu0 %v570
        %v1188 = vpop.f32.mrf.mxu0
        %v1189 = vadd.f32 %v1084, %v1188
        %v1190 = vpop.f32.mrf.mxu0
        %1191 = vmatprep.mubr.f32.mxu0 0.0
        %1192 = vmatmul.mubr.f32.gmra.mxu0 %v573
        %v1193 = vpop.f32.mrf.mxu0
        %v1194 = vadd.f32 %v1089, %v1193
        %v1195 = vpop.f32.mrf.mxu0
        %1196 = vmatprep.mubr.f32.mxu0 0.0
        %1197 = vmatmul.mubr.f32.gmra.mxu0 %v576
        %v1198 = vpop.f32.mrf.mxu0
        %v1199 = vadd.f32 %v1094, %v1198
        %v1200 = vpop.f32.mrf.mxu0
        %1201 = vmatprep.mubr.f32.mxu0 0.0
        %1202 = vmatmul.mubr.f32.gmra.mxu0 %v579
        %v1203 = vpop.f32.mrf.mxu0
        %v1204 = vadd.f32 %v1099, %v1203
        %v1205 = vpop.f32.mrf.mxu0
        %1206 = vmatprep.mubr.f32.mxu0 0.0
        %1207 = vmatmul.mubr.f32.gmra.mxu0 %v582
        %v1208 = vpop.f32.mrf.mxu0
        %v1209 = vadd.f32 %v1104, %v1208
        %v1210 = vpop.f32.mrf.mxu0
        %1211 = vmatprep.mubr.f32.mxu0 0.0
        %1212 = vmatmul.mubr.f32.gmra.mxu0 %v585
        %v1213 = vpop.f32.mrf.mxu0
        %v1214 = vadd.f32 %v1109, %v1213
        %v1215 = vpop.f32.mrf.mxu0
        %1216 = vdwg.mxu0
        %v1217 = vadd.f32 %v1179, %v1184
        %v1218 = vadd.f32 %v1217, %v1189
        %v1219 = vadd.f32 %v1218, %v1194
        %v1220 = vadd.f32 %v1219, %v1199
        %v1221 = vadd.f32 %v1220, %v1204
        %v1222 = vadd.f32 %v1221, %v1209
        %v1223 = vadd.f32 %v1222, %v1214
        %v1224 = vrot.slane %v1223, 4
        %v1225 = vadd.f32 %v1223, %v1224
        %v1226 = vrot.slane %v1225, 2
        %v1227 = vadd.f32 %v1225, %v1226
        %v1228 = vrot.slane %v1227, 1
        %v1229 = vadd.f32 %v1227, %v1228
        %v1230 = vrcp.pop 64.0
        %v1231 = vmul.f32 %v1229, %v1230
        %v1232 = vld [vmem:[%s2] sm:$0xff]
        %v1233 = vld [vmem:[%s2 + $0x8] sm:$0xff]
        %v1234 = vld [vmem:[%s2 + $0x10] sm:$0xff]
        %v1235 = vld [vmem:[%s2 + $0x18] sm:$0xff]
        %v1236 = vld [vmem:[%s2 + $0x20] sm:$0xff]
        %v1237 = vld [vmem:[%s2 + $0x28] sm:$0xff]
        %v1238 = vld [vmem:[%s2 + $0x30] sm:$0xff]
        %v1239 = vld [vmem:[%s2 + $0x38] sm:$0xff]
        %v1240 = vld [vmem:[%s2 + $0x40] sm:$0xff]
        %v1241 = vld [vmem:[%s2 + $0x48] sm:$0xff]
        %v1242 = vld [vmem:[%s2 + $0x50] sm:$0xff]
        %v1243 = vld [vmem:[%s2 + $0x58] sm:$0xff]
        %v1244 = vld [vmem:[%s2 + $0x60] sm:$0xff]
        %v1245 = vld [vmem:[%s2 + $0x68] sm:$0xff]
        %v1246 = vld [vmem:[%s2 + $0x70] sm:$0xff]
        %v1247 = vld [vmem:[%s2 + $0x78] sm:$0xff]
        %v1248 = vld [vmem:[%s3] sm:$0x1]
        %1249 = vmatprep.subr.mxu0 0.0
        %1250 = vmatpush1.msra.mxu0 %v1247
        %1251 = vmatprep.subr.mxu0 0.0
        %1252 = vmatpush1.msra.mxu0 %v1246
        %1253 = vmatprep.subr.mxu0 0.0
        %1254 = vmatpush1.msra.mxu0 %v1245
        %1255 = vmatprep.subr.mxu0 0.0
        %1256 = vmatpush1.msra.mxu0 %v1244
        %1257 = vmatprep.subr.mxu0 0.0
        %1258 = vmatpush1.msra.mxu0 %v1243
        %1259 = vmatprep.subr.mxu0 0.0
        %1260 = vmatpush1.msra.mxu0 %v1242
        %1261 = vmatprep.subr.mxu0 0.0
        %1262 = vmatpush1.msra.mxu0 %v1241
        %1263 = vmatprep.subr.mxu0 0.0
        %1264 = vmatpush1.msra.mxu0 %v1240
        %1265 = vmatprep.subr.mxu0 0.0
        %1266 = vmatpush1.msra.mxu0 %v1239
        %1267 = vmatprep.subr.mxu0 0.0
        %1268 = vmatpush1.msra.mxu0 %v1238
        %1269 = vmatprep.subr.mxu0 0.0
        %1270 = vmatpush1.msra.mxu0 %v1237
        %1271 = vmatprep.subr.mxu0 0.0
        %1272 = vmatpush1.msra.mxu0 %v1236
        %1273 = vmatprep.subr.mxu0 0.0
        %1274 = vmatpush1.msra.mxu0 %v1235
        %1275 = vmatprep.subr.mxu0 0.0
        %1276 = vmatpush1.msra.mxu0 %v1234
        %1277 = vmatprep.subr.mxu0 0.0
        %1278 = vmatpush1.msra.mxu0 %v1233
        %1279 = vmatprep.subr.mxu0 0.0
        %1280 = vmatpush1.msra.mxu0 %v1232
        %1281 = vmatprep.subr.mxu0 0.0
        %1282 = vmatpush2.msra.mxu0 0.0
        %1283 = vmatprep.subr.mxu0 0.0
        %1284 = vmatpush2.msra.mxu0 0.0
        %1285 = vmatprep.subr.mxu0 0.0
        %1286 = vmatpush2.msra.mxu0 0.0
        %1287 = vmatprep.subr.mxu0 0.0
        %1288 = vmatpush2.msra.mxu0 0.0
        %1289 = vmatprep.subr.mxu0 0.0
        %1290 = vmatpush2.msra.mxu0 0.0
        %1291 = vmatprep.subr.mxu0 0.0
        %1292 = vmatpush2.msra.mxu0 0.0
        %1293 = vmatprep.subr.mxu0 0.0
        %1294 = vmatpush2.msra.mxu0 0.0
        %1295 = vmatprep.subr.mxu0 0.0
        %1296 = vmatpush2.msra.mxu0 0.0
        %1297 = vmatprep.subr.mxu0 0.0
        %1298 = vmatpush2.msra.mxu0 0.0
        %1299 = vmatprep.subr.mxu0 0.0
        %1300 = vmatpush2.msra.mxu0 0.0
        %1301 = vmatprep.subr.mxu0 0.0
        %1302 = vmatpush2.msra.mxu0 0.0
        %1303 = vmatprep.subr.mxu0 0.0
        %1304 = vmatpush2.msra.mxu0 0.0
        %1305 = vmatprep.subr.mxu0 0.0
        %1306 = vmatpush2.msra.mxu0 0.0
        %1307 = vmatprep.subr.mxu0 0.0
        %1308 = vmatpush2.msra.mxu0 0.0
        %1309 = vmatprep.subr.mxu0 0.0
        %1310 = vmatpush2.msra.mxu0 0.0
        %1311 = vmatprep.subr.mxu0 0.0
        %1312 = vmatpush2.msra.mxu0 0.0
        %1313 = vmatprep.mubr.f32.mxu0 0.0
        %1314 = vmatmul.mubr.f32.gmra.mxu0 %v1231
        %v1315 = vpop.f32.mrf.mxu0
        %v1316 = vadd.f32 %v1248, %v1315
        %v1317 = vpop.f32.mrf.mxu0
        %1318 = vdwg.mxu0
        %v1319 = vmax.f32 %v1316, 0.0
        %v1320 = vld [vmem:[%s4] sm:$0xff]
        %v1321 = vld [vmem:[%s5] sm:$0x1]
        %vm1322 = vcmask 64512
        %v1324 = vsel %vm1322, %v1319, 0
        %1326 = vmatprep.subr.mxu0 0.0
        %1327 = vmatpush1.msra.mxu0 0.0
        %1328 = vmatprep.subr.mxu0 0.0
        %1329 = vmatpush1.msra.mxu0 0.0
        %1330 = vmatprep.subr.mxu0 0.0
        %1331 = vmatpush1.msra.mxu0 0.0
        %1332 = vmatprep.subr.mxu0 0.0
        %1333 = vmatpush1.msra.mxu0 0.0
        %1334 = vmatprep.subr.mxu0 0.0
        %1335 = vmatpush1.msra.mxu0 0.0
        %1336 = vmatprep.subr.mxu0 0.0
        %1337 = vmatpush1.msra.mxu0 0.0
        %1338 = vmatprep.subr.mxu0 0.0
        %1339 = vmatpush1.msra.mxu0 0.0
        %1340 = vmatprep.subr.mxu0 0.0
        %1341 = vmatpush1.msra.mxu0 0.0
        %1342 = vmatprep.subr.mxu0 0.0
        %1343 = vmatpush1.msra.mxu0 0.0
        %1344 = vmatprep.subr.mxu0 0.0
        %1345 = vmatpush1.msra.mxu0 0.0
        %1346 = vmatprep.subr.mxu0 0.0
        %1347 = vmatpush1.msra.mxu0 0.0
        %1348 = vmatprep.subr.mxu0 0.0
        %1349 = vmatpush1.msra.mxu0 0.0
        %1350 = vmatprep.subr.mxu0 0.0
        %1351 = vmatpush1.msra.mxu0 0.0
        %1352 = vmatprep.subr.mxu0 0.0
        %1353 = vmatpush1.msra.mxu0 0.0
        %1354 = vmatprep.subr.mxu0 0.0
        %1355 = vmatpush1.msra.mxu0 0.0
        %1356 = vmatprep.subr.mxu0 0.0
        %1357 = vmatpush1.msra.mxu0 %v1320
        %1358 = vmatprep.subr.mxu0 0.0
        %1359 = vmatpush2.msra.mxu0 0.0
        %1360 = vmatprep.subr.mxu0 0.0
        %1361 = vmatpush2.msra.mxu0 0.0
        %1362 = vmatprep.subr.mxu0 0.0
        %1363 = vmatpush2.msra.mxu0 0.0
        %1364 = vmatprep.subr.mxu0 0.0
        %1365 = vmatpush2.msra.mxu0 0.0
        %1366 = vmatprep.subr.mxu0 0.0
        %1367 = vmatpush2.msra.mxu0 0.0
        %1368 = vmatprep.subr.mxu0 0.0
        %1369 = vmatpush2.msra.mxu0 0.0
        %1370 = vmatprep.subr.mxu0 0.0
        %1371 = vmatpush2.msra.mxu0 0.0
        %1372 = vmatprep.subr.mxu0 0.0
        %1373 = vmatpush2.msra.mxu0 0.0
        %1374 = vmatprep.subr.mxu0 0.0
        %1375 = vmatpush2.msra.mxu0 0.0
        %1376 = vmatprep.subr.mxu0 0.0
        %1377 = vmatpush2.msra.mxu0 0.0
        %1378 = vmatprep.subr.mxu0 0.0
        %1379 = vmatpush2.msra.mxu0 0.0
        %1380 = vmatprep.subr.mxu0 0.0
        %1381 = vmatpush2.msra.mxu0 0.0
        %1382 = vmatprep.subr.mxu0 0.0
        %1383 = vmatpush2.msra.mxu0 0.0
        %1384 = vmatprep.subr.mxu0 0.0
        %1385 = vmatpush2.msra.mxu0 0.0
        %1386 = vmatprep.subr.mxu0 0.0
        %1387 = vmatpush2.msra.mxu0 0.0
        %1388 = vmatprep.subr.mxu0 0.0
        %1389 = vmatpush2.msra.mxu0 0.0
        %1390 = vmatprep.mubr.f32.mxu0 0.0
        %1391 = vmatmul.mubr.f32.gmra.mxu0 %v1324
        %v1392 = vpop.f32.mrf.mxu0
        %v1393 = vadd.f32 %v1321, %v1392
        %v1394 = vpop.f32.mrf.mxu0
        %1395 = vdwg.mxu0
        %v1396 = vxor.u32 %v1393, 2147483648
        %v1397 = vmul.f32 %v1396, 1.442695
        %v1398 = vpow.pop %v1397
        %v1399 = vadd.f32 %v1398, 1.0
        %v1400 = vrcp.pop %v1399
        %v1401 = vmul.f32 1.0, %v1400
        %v1402 = vmul.f32 %v1401, 1.442695
        %v1403 = vpow.pop %v1402
        %v1404 = vld [vmem:[%s6] sm:$0xff]
        %v1405 = vld [vmem:[%s6 + $0x8] sm:$0xff]
        %v1406 = vld [vmem:[%s6 + $0x10] sm:$0xff]
        %v1407 = vld [vmem:[%s6 + $0x18] sm:$0xff]
        %v1408 = vld [vmem:[%s6 + $0x20] sm:$0xff]
        %v1409 = vld [vmem:[%s6 + $0x28] sm:$0xff]
        %v1410 = vld [vmem:[%s6 + $0x30] sm:$0xff]
        %v1411 = vld [vmem:[%s6 + $0x38] sm:$0xff]
        %v1412 = vld [vmem:[%s6 + $0x40] sm:$0xff]
        %v1413 = vld [vmem:[%s6 + $0x48] sm:$0xff]
        %v1414 = vld [vmem:[%s6 + $0x50] sm:$0xff]
        %v1415 = vld [vmem:[%s6 + $0x58] sm:$0xff]
        %v1416 = vld [vmem:[%s6 + $0x60] sm:$0xff]
        %v1417 = vld [vmem:[%s6 + $0x68] sm:$0xff]
        %v1418 = vld [vmem:[%s6 + $0x70] sm:$0xff]
        %v1419 = vld [vmem:[%s6 + $0x78] sm:$0xff]
        %1420 = vmatprep.subr.mxu0 0.0
        %1421 = vmatpush1.msra.mxu0 %v1419
        %1422 = vmatprep.subr.mxu0 0.0
        %1423 = vmatpush1.msra.mxu0 %v1418
        %1424 = vmatprep.subr.mxu0 0.0
        %1425 = vmatpush1.msra.mxu0 %v1417
        %1426 = vmatprep.subr.mxu0 0.0
        %1427 = vmatpush1.msra.mxu0 %v1416
        %1428 = vmatprep.subr.mxu0 0.0
        %1429 = vmatpush1.msra.mxu0 %v1415
        %1430 = vmatprep.subr.mxu0 0.0
        %1431 = vmatpush1.msra.mxu0 %v1414
        %1432 = vmatprep.subr.mxu0 0.0
        %1433 = vmatpush1.msra.mxu0 %v1413
        %1434 = vmatprep.subr.mxu0 0.0
        %1435 = vmatpush1.msra.mxu0 %v1412
        %1436 = vmatprep.subr.mxu0 0.0
        %1437 = vmatpush1.msra.mxu0 %v1411
        %1438 = vmatprep.subr.mxu0 0.0
        %1439 = vmatpush1.msra.mxu0 %v1410
        %1440 = vmatprep.subr.mxu0 0.0
        %1441 = vmatpush1.msra.mxu0 %v1409
        %1442 = vmatprep.subr.mxu0 0.0
        %1443 = vmatpush1.msra.mxu0 %v1408
        %1444 = vmatprep.subr.mxu0 0.0
        %1445 = vmatpush1.msra.mxu0 %v1407
        %1446 = vmatprep.subr.mxu0 0.0
        %1447 = vmatpush1.msra.mxu0 %v1406
        %1448 = vmatprep.subr.mxu0 0.0
        %1449 = vmatpush1.msra.mxu0 %v1405
        %1450 = vmatprep.subr.mxu0 0.0
        %1451 = vmatpush1.msra.mxu0 %v1404
        %1452 = vmatprep.subr.mxu0 0.0
        %1453 = vmatpush2.msra.mxu0 0.0
        %1454 = vmatprep.subr.mxu0 0.0
        %1455 = vmatpush2.msra.mxu0 0.0
        %1456 = vmatprep.subr.mxu0 0.0
        %1457 = vmatpush2.msra.mxu0 0.0
        %1458 = vmatprep.subr.mxu0 0.0
        %1459 = vmatpush2.msra.mxu0 0.0
        %1460 = vmatprep.subr.mxu0 0.0
        %1461 = vmatpush2.msra.mxu0 0.0
        %1462 = vmatprep.subr.mxu0 0.0
        %1463 = vmatpush2.msra.mxu0 0.0
        %1464 = vmatprep.subr.mxu0 0.0
        %1465 = vmatpush2.msra.mxu0 0.0
        %1466 = vmatprep.subr.mxu0 0.0
        %1467 = vmatpush2.msra.mxu0 0.0
        %1468 = vmatprep.subr.mxu0 0.0
        %1469 = vmatpush2.msra.mxu0 0.0
        %1470 = vmatprep.subr.mxu0 0.0
        %1471 = vmatpush2.msra.mxu0 0.0
        %1472 = vmatprep.subr.mxu0 0.0
        %1473 = vmatpush2.msra.mxu0 0.0
        %1474 = vmatprep.subr.mxu0 0.0
        %1475 = vmatpush2.msra.mxu0 0.0
        %1476 = vmatprep.subr.mxu0 0.0
        %1477 = vmatpush2.msra.mxu0 0.0
        %1478 = vmatprep.subr.mxu0 0.0
        %1479 = vmatpush2.msra.mxu0 0.0
        %1480 = vmatprep.subr.mxu0 0.0
        %1481 = vmatpush2.msra.mxu0 0.0
        %1482 = vmatprep.subr.mxu0 0.0
        %1483 = vmatpush2.msra.mxu0 0.0
        %1484 = vmatprep.mubr.f32.mxu0 0.0
        %1485 = vmatmul.mubr.f32.gmra.mxu0 %v1403
        %v1486 = vpop.f32.mrf.mxu0
        %v1487 = vadd.f32 0.0, %v1486
        %v1488 = vpop.f32.mrf.mxu0
        %1489 = vdwg.mxu0
        %v1490 = vrcp.pop %v1487
        %v1491 = vmul.f32 %v1403, %v1490
        %v1492 = vlaneseq
        %v1493 = vshrl.u32 %v1492, 7
        %v1494 = vsub.s32 0, %v1493
        %v1495 = vrot.slane %v1491, %v1494
        %v1496 = vmul.f32 %v1179, %v1495
        %v1497 = vmul.f32 %v1184, %v1495
        %v1498 = vmul.f32 %v1189, %v1495
        %v1499 = vmul.f32 %v1194, %v1495
        %v1500 = vmul.f32 %v1199, %v1495
        %v1501 = vmul.f32 %v1204, %v1495
        %v1502 = vmul.f32 %v1209, %v1495
        %v1503 = vmul.f32 %v1214, %v1495
        %1504 = vst [vmem:[%s311] sm:$0xff] %v1496
        %1505 = vst [vmem:[%s311 + $0x8] sm:$0xff] %v1497
        %1506 = vst [vmem:[%s311 + $0x10] sm:$0xff] %v1498
        %1507 = vst [vmem:[%s311 + $0x18] sm:$0xff] %v1499
        %1508 = vst [vmem:[%s311 + $0x20] sm:$0xff] %v1500
        %1509 = vst [vmem:[%s311 + $0x28] sm:$0xff] %v1501
        %1510 = vst [vmem:[%s311 + $0x30] sm:$0xff] %v1502
        %1511 = vst [vmem:[%s311 + $0x38] sm:$0xff] %v1503
        %s1512 = sand.u32 %s185, 1
        %s1513 = scalar_lea.sflag [#allocation4], %s1512
        %s1514 = sand.u32 %s185, 1
        %s1515 = smul.addr %s1514, 64
        %s1516 = scalar_lea.vmem [#allocation7], %s1515
        // Predicated region
        $region57: #{tpu_custom_call.1} parent=47 // pred_check
          %p1517 = pneg %p195
        $region58: #{tpu_custom_call.1} parent=47 // pred_check_branch
          %1519 = sbr.rel (%p1517) target = $region60
        $region59: #{tpu_custom_call.1} parent=47 // pred_region
          %s1521 = ssub.s32 1024, 1024
          %1522 = vsyncadd %s1513, %s1521
          %s1523 = smul.addr %s25, 8
          %s1524 = smul.addr %s1523, 128
          %s1525 = scalar_lea.hbm %s7, %s1524
          %s1526 = sshll.u32 %s1516, 4
          %s1527 = int_to_ptr.vmem [resolvable:$true] %s1526
          %1532 = dma.vmem_to_hbm [thread:$0]  %s1527, 1024, %s1525, %s1513, 128, 128, 8
        $region60: #{tpu_custom_call.1} parent=47 // pred_fallthru
          _
      $region48: #{tpu_custom_call.1} parent=5 // pred_fallthru
        _
      %p1533 = scmp.le.s32.totalorder 2, %s20
      // Predicated region
      $region61: #{tpu_custom_call.1} parent=5 // pred_check
        %p1534 = pneg %p1533
      $region62: #{tpu_custom_call.1} parent=5 // pred_check_branch
        %1536 = sbr.rel (%p1534) target = $region64
      $region63: #{tpu_custom_call.1} parent=5 // pred_region
        %s1537 = ssub.s32 %s20, 2
        // Predicated region
        $region65: #{tpu_custom_call.1} parent=63 // pred_check
          %p1538 = pneg %p201
        $region66: #{tpu_custom_call.1} parent=63 // pred_check_branch
          %1540 = sbr.rel (%p1538) target = $region68
        $region67: #{tpu_custom_call.1} parent=63 // pred_region
          %s1541 = sand.u32 %s186, 1
          %s1542 = scalar_lea.sflag [#allocation4], %s1541
          %s1543 = sand.u32 %s186, 1
          %s1544 = smul.addr %s1543, 64
          %s1545 = scalar_lea.vmem [#allocation7], %s1544
          %1546 = dma.done %s1542, 1024
        $region68: #{tpu_custom_call.1} parent=63 // pred_fallthru
          _
      $region64: #{tpu_custom_call.1} parent=5 // pred_fallthru
        _
    $region6: #{tpu_custom_call.1} parent=1 // loop_footer
      %s24 = sadd.s32 1, %s20
    $region7: #{tpu_custom_call.1} parent=1 // loop_footer_branch
      %19 = sbr.rel target = $region3
    $region8: #{tpu_custom_call.1} parent=1 // loop_exit
      _
    %1547 = vsyncpa [#allocation3], 1
    %s1548 = scalar_lea.sflag [#allocation3], 1
    %1549 = vsyncpa %s1548, 1
    %1550 = vsyncpa [#allocation6], 1
    %1551 = vsyncpa [#allocation4], 1
    %s1552 = scalar_lea.sflag [#allocation4], 1
    %1553 = vsyncpa %s1552, 1

</llo_original>
